<compile_context>
chip_gen: v6e
topology: v6e:2x2x1
jax: 0.10.0
libtpu: 0.0.40
codegen_flags: <defaults>
</compile_context>

<pallas_src>
import functools

import jax
import jax.numpy as jnp
from jax.experimental import pallas as pl
from jax.experimental.pallas import tpu as pltpu


def _round_up(x, m):
    return (x + m - 1) // m * m


# ----------------------------------------------------------------------------
# Fused kernel: all LSTM layers + head in one invocation (grid = ())
# ----------------------------------------------------------------------------

def _fused_lstm_kernel(*refs, num_layers, T, B, H):
    """refs layout:
      refs[0]                       : t_sel (1,) int32            [SMEM]
      refs[1]                       : x     (T*B, E) f32          [VMEM]
      refs[2 + 3*l + {0,1,2}]       : wih_t (in,4H), whh_t (H,4H), b (1,4H)
      refs[2+3*L .. 5+3*L]          : w1_t (H,128), b1 (1,128), w2_t (128,C), b2 (1,C)
      refs[6 + 3*L]                 : out   (B, C) f32            [VMEM]
    """
    tsel_ref = refs[0]
    x_ref = refs[1]
    layer_refs = refs[2:2 + 3 * num_layers]
    w1_ref, bfc1_ref, w2_ref, bfc2_ref = refs[2 + 3 * num_layers:6 + 3 * num_layers]
    out_ref = refs[6 + 3 * num_layers]

    t_sel = tsel_ref[0]
    seq = x_ref[...]                                    # (T*B, E) time-major
    h_sel = jnp.zeros((B, H), jnp.float32)

    for l in range(num_layers):
        wih = layer_refs[3 * l][...]                    # (in, 4H)
        whh = layer_refs[3 * l + 1][...]                # (H, 4H)
        b = layer_refs[3 * l + 2][...]                  # (1, 4H)

        # Hoisted input projection: one MXU matmul for all T timesteps.
        xp = jnp.dot(seq, wih, preferred_element_type=jnp.float32) + b  # (T*B, 4H)

        h = jnp.zeros((B, H), jnp.float32)
        c = jnp.zeros((B, H), jnp.float32)
        outs = []
        last_layer = (l == num_layers - 1)
        for t in range(T):                              # serial recurrence, fully unrolled
            gates = xp[t * B:(t + 1) * B, :] + jnp.dot(
                h, whh, preferred_element_type=jnp.float32)             # (B, 4H)
            i = jax.nn.sigmoid(gates[:, 0 * H:1 * H])
            f = jax.nn.sigmoid(gates[:, 1 * H:2 * H])
            g = jnp.tanh(gates[:, 2 * H:3 * H])
            o = jax.nn.sigmoid(gates[:, 3 * H:4 * H])
            c = f * c + i * g
            h = o * jnp.tanh(c)
            if last_layer:
                # Keep only the timestep the head consumes; never materialize (T,B,H).
                h_sel = jnp.where(t == t_sel, h, h_sel)
            else:
                outs.append(h)
        if not last_layer:
            seq = jnp.concatenate(outs, axis=0)         # (T*B, H) input to next layer

    # Fused head: fc_1 -> ReLU -> fc_2.
    hfc = jnp.maximum(
        jnp.dot(h_sel, w1_ref[...], preferred_element_type=jnp.float32)
        + bfc1_ref[...], 0.0)
    out_ref[...] = (jnp.dot(hfc, w2_ref[...], preferred_element_type=jnp.float32)
                    + bfc2_ref[...])


# ----------------------------------------------------------------------------
# Wrapper
# ----------------------------------------------------------------------------

def news_lstm_forward(params, token_ids, lengths):
    """Reproduces NewsLSTM_word2vec.forward((token_ids, lengths))."""
    emb = params["emb"]
    B, T = token_ids.shape
    E = emb.shape[1]
    H = params["lstm"][0]["whh_t"].shape[0]
    C = params["w2_t"].shape[1]
    num_layers = len(params["lstm"])

    # Embedding gather directly in time-major order (glue, plain JAX).
    x = emb[jnp.transpose(token_ids)]                   # (T, B, E) f32
    B_pad = max(8, _round_up(B, 8))                     # sublane granularity
    if B_pad != B:
        x = jnp.pad(x, ((0, 0), (0, B_pad - B), (0, 0)))
    x = x.reshape(T * B_pad, E)

    # out[:, x[1].long()-1, :][:, -1, :]  ==  out[:, lengths[-1]-1, :]
    t_sel = (lengths[-1].astype(jnp.int32) - 1).reshape(1)

    flat_weights = []
    for layer in params["lstm"]:
        flat_weights += [layer["wih_t"], layer["whh_t"], layer["b"]]
    flat_weights += [params["w1_t"], params["b1"], params["w2_t"], params["b2"]]

    n_vmem_inputs = 1 + len(flat_weights)               # x + all weights
    out = pl.pallas_call(
        functools.partial(_fused_lstm_kernel, num_layers=num_layers,
                          T=T, B=B_pad, H=H),
        out_shape=jax.ShapeDtypeStruct((B_pad, C), jnp.float32),
        in_specs=([pl.BlockSpec(memory_space=pltpu.MemorySpace.SMEM)]
                  + [pl.BlockSpec(memory_space=pltpu.MemorySpace.VMEM)]
                  * n_vmem_inputs),
        out_specs=pl.BlockSpec(memory_space=pltpu.MemorySpace.VMEM),
    )(t_sel, x, *flat_weights)
    return out[:B]


# ----------------------------------------------------------------------------
# Pure-JAX reference (for correctness check)
# ----------------------------------------------------------------------------

def ref_forward(params, token_ids, lengths):
    x = params["emb"][token_ids].astype(jnp.float32)    # (B, T, E)
    B, T, _ = x.shape
    H = params["lstm"][0]["whh_t"].shape[0]
    seq = x
    for layer in params["lstm"]:
        wih_t, whh_t, b = layer["wih_t"], layer["whh_t"], layer["b"]
        h = jnp.zeros((B, H), jnp.float32)
        c = jnp.zeros((B, H), jnp.float32)
        outs = []
        for t in range(T):
            gates = seq[:, t, :] @ wih_t + h @ whh_t + b
            i = jax.nn.sigmoid(gates[:, :H])
            f = jax.nn.sigmoid(gates[:, H:2 * H])
            g = jnp.tanh(gates[:, 2 * H:3 * H])
            o = jax.nn.sigmoid(gates[:, 3 * H:])
            c = f * c + i * g
            h = o * jnp.tanh(c)
            outs.append(h)
        seq = jnp.stack(outs, axis=1)
    t_sel = lengths[-1] - 1
    last = seq[:, t_sel, :]
    hfc = jnp.maximum(last @ params["w1_t"] + params["b1"], 0.0)
    return hfc @ params["w2_t"] + params["b2"]


# ----------------------------------------------------------------------------
# Deterministic parameter init
# ----------------------------------------------------------------------------

def init_params(key, vocab, input_size, hidden_size, num_layers, num_classes):
    keys = jax.random.split(key, 3 + 4 * num_layers)
    k_emb, k_fc1, k_fc2 = keys[0], keys[1], keys[2]
    scale = 1.0 / jnp.sqrt(hidden_size)

    emb = jax.random.normal(k_emb, (vocab, input_size), jnp.float32)

    lstm = []
    for l in range(num_layers):
        in_dim = input_size if l == 0 else hidden_size
        kw, kr, kbi, kbh = keys[3 + 4 * l: 3 + 4 * (l + 1)]
        w_ih = jax.random.uniform(kw, (4 * hidden_size, in_dim), jnp.float32,
                                  -scale, scale)
        w_hh = jax.random.uniform(kr, (4 * hidden_size, hidden_size), jnp.float32,
                                  -scale, scale)
        b_ih = jax.random.uniform(kbi, (4 * hidden_size,), jnp.float32, -scale, scale)
        b_hh = jax.random.uniform(kbh, (4 * hidden_size,), jnp.float32, -scale, scale)
        lstm.append(dict(
            wih_t=jnp.transpose(w_ih),                  # (in_dim, 4H)
            whh_t=jnp.transpose(w_hh),                  # (H, 4H)
            b=(b_ih + b_hh)[None, :],                   # (1, 4H)
        ))

    w1 = jax.random.uniform(k_fc1, (128, hidden_size), jnp.float32, -scale, scale)
    b1 = jnp.zeros((1, 128), jnp.float32)
    w2 = jax.random.uniform(k_fc2, (num_classes, 128), jnp.float32,
                            -1.0 / jnp.sqrt(128.0), 1.0 / jnp.sqrt(128.0))
    b2 = jnp.zeros((1, num_classes), jnp.float32)

    return dict(emb=emb, lstm=lstm,
                w1_t=jnp.transpose(w1), b1=b1,
                w2_t=jnp.transpose(w2), b2=b2)


# ----------------------------------------------------------------------------
# Main
# ----------------------------------------------------------------------------

if __name__ == "__main__":
    B, T = 2, 8
    VOCAB = 50
    INPUT_SIZE = 32      # embedding dim / LSTM input_size
    HIDDEN = 32
    NUM_LAYERS = 2
    NUM_CLASSES = 4

    key = jax.random.PRNGKey(0)
    k_par, k_tok = jax.random.split(key)

    params = init_params(k_par, VOCAB, INPUT_SIZE, HIDDEN, NUM_LAYERS, NUM_CLASSES)

    token_ids = jax.random.randint(k_tok, (B, T), 0, VOCAB, dtype=jnp.int32)
    lengths = jnp.array([5, 8], dtype=jnp.int32)   # x[1] in the PyTorch forward

    out = news_lstm_forward(params, token_ids, lengths)
    out = jax.block_until_ready(out)

    ref = jax.block_until_ready(ref_forward(params, token_ids, lengths))
    assert out.shape == (B, NUM_CLASSES), out.shape
    assert jnp.allclose(out, ref, rtol=1e-4, atol=1e-5), (out, ref)

    print("KERNEL_OK")
</pallas_src>

<mosaic_0001>
module attributes {stable_mosaic.version = 11 : i64} {
  func.func @_fused_lstm_kernel(%arg0: memref<1xi32, #tpu.memory_space<smem>>, %arg1: memref<64x32xf32, #tpu.memory_space<vmem>>, %arg2: memref<32x128xf32, #tpu.memory_space<vmem>>, %arg3: memref<32x128xf32, #tpu.memory_space<vmem>>, %arg4: memref<1x128xf32, #tpu.memory_space<vmem>>, %arg5: memref<32x128xf32, #tpu.memory_space<vmem>>, %arg6: memref<32x128xf32, #tpu.memory_space<vmem>>, %arg7: memref<1x128xf32, #tpu.memory_space<vmem>>, %arg8: memref<32x128xf32, #tpu.memory_space<vmem>>, %arg9: memref<1x128xf32, #tpu.memory_space<vmem>>, %arg10: memref<128x4xf32, #tpu.memory_space<vmem>>, %arg11: memref<1x4xf32, #tpu.memory_space<vmem>>, %arg12: memref<8x4xf32, #tpu.memory_space<vmem>>) attributes {dimension_semantics = [], scalar_prefetch = 0 : i64, scratch_operands = 0 : i64, tpu.core_type = #tpu.core_type<tc>} {
    %c0 = arith.constant 0 : index
    %0 = memref.load %arg0[%c0] : memref<1xi32, #tpu.memory_space<smem>>
    %c0_0 = arith.constant 0 : index
    %c0_1 = arith.constant 0 : index
    %1 = vector.load %arg1[%c0_0, %c0_1] : memref<64x32xf32, #tpu.memory_space<vmem>>, vector<64x32xf32>
    %cst = arith.constant 0.000000e+00 : f32
    %2 = vector.broadcast %cst : f32 to vector<8x32xf32>
    %c0_2 = arith.constant 0 : index
    %c0_3 = arith.constant 0 : index
    %3 = vector.load %arg2[%c0_2, %c0_3] : memref<32x128xf32, #tpu.memory_space<vmem>>, vector<32x128xf32>
    %c0_4 = arith.constant 0 : index
    %c0_5 = arith.constant 0 : index
    %4 = vector.load %arg3[%c0_4, %c0_5] : memref<32x128xf32, #tpu.memory_space<vmem>>, vector<32x128xf32>
    %c0_6 = arith.constant 0 : index
    %c0_7 = arith.constant 0 : index
    %5 = vector.load %arg4[%c0_6, %c0_7] : memref<1x128xf32, #tpu.memory_space<vmem>>, vector<1x128xf32>
    %cst_8 = arith.constant dense<0.000000e+00> : vector<64x128xf32>
    %6 = tpu.matmul %1, %3, %cst_8 {dimension_numbers = #tpu.dot_dimension_numbers<[1], [0], [0], [1], [0, 0, 1, 1], [], []>} : vector<64x32xf32>, vector<32x128xf32>, vector<64x128xf32> -> vector<64x128xf32>
    %7 = vector.broadcast %5 : vector<1x128xf32> to vector<64x128xf32>
    %8 = arith.addf %6, %7 : vector<64x128xf32>
    %cst_9 = arith.constant 0.000000e+00 : f32
    %9 = vector.broadcast %cst_9 : f32 to vector<8x32xf32>
    %cst_10 = arith.constant 0.000000e+00 : f32
    %10 = vector.broadcast %cst_10 : f32 to vector<8x32xf32>
    %11 = vector.extract_strided_slice %8 {offsets = [0, 0], sizes = [8, 128], strides = [1, 1]} : vector<64x128xf32> to vector<8x128xf32>
    %cst_11 = arith.constant dense<0.000000e+00> : vector<8x128xf32>
    %12 = tpu.matmul %9, %4, %cst_11 {dimension_numbers = #tpu.dot_dimension_numbers<[1], [0], [0], [1], [0, 0, 1, 1], [], []>} : vector<8x32xf32>, vector<32x128xf32>, vector<8x128xf32> -> vector<8x128xf32>
    %13 = arith.addf %11, %12 : vector<8x128xf32>
    %14 = vector.extract_strided_slice %13 {offsets = [0, 0], sizes = [8, 32], strides = [1, 1]} : vector<8x128xf32> to vector<8x32xf32>
    %15 = arith.negf %14 : vector<8x32xf32>
    %16 = math.exp %15 : vector<8x32xf32>
    %cst_12 = arith.constant 1.000000e+00 : f32
    %17 = vector.broadcast %cst_12 : f32 to vector<8x32xf32>
    %18 = arith.addf %17, %16 : vector<8x32xf32>
    %19 = arith.divf %17, %18 : vector<8x32xf32>
    %20 = vector.extract_strided_slice %13 {offsets = [0, 32], sizes = [8, 32], strides = [1, 1]} : vector<8x128xf32> to vector<8x32xf32>
    %21 = arith.negf %20 : vector<8x32xf32>
    %22 = math.exp %21 : vector<8x32xf32>
    %cst_13 = arith.constant 1.000000e+00 : f32
    %23 = vector.broadcast %cst_13 : f32 to vector<8x32xf32>
    %24 = arith.addf %23, %22 : vector<8x32xf32>
    %25 = arith.divf %23, %24 : vector<8x32xf32>
    %26 = vector.extract_strided_slice %13 {offsets = [0, 64], sizes = [8, 32], strides = [1, 1]} : vector<8x128xf32> to vector<8x32xf32>
    %27 = math.tanh %26 : vector<8x32xf32>
    %28 = vector.extract_strided_slice %13 {offsets = [0, 96], sizes = [8, 32], strides = [1, 1]} : vector<8x128xf32> to vector<8x32xf32>
    %29 = arith.negf %28 : vector<8x32xf32>
    %30 = math.exp %29 : vector<8x32xf32>
    %cst_14 = arith.constant 1.000000e+00 : f32
    %31 = vector.broadcast %cst_14 : f32 to vector<8x32xf32>
    %32 = arith.addf %31, %30 : vector<8x32xf32>
    %33 = arith.divf %31, %32 : vector<8x32xf32>
    %34 = arith.mulf %25, %10 : vector<8x32xf32>
    %35 = arith.mulf %19, %27 : vector<8x32xf32>
    %36 = arith.addf %34, %35 : vector<8x32xf32>
    %37 = math.tanh %36 : vector<8x32xf32>
    %38 = arith.mulf %33, %37 : vector<8x32xf32>
    %39 = vector.extract_strided_slice %8 {offsets = [8, 0], sizes = [8, 128], strides = [1, 1]} : vector<64x128xf32> to vector<8x128xf32>
    %cst_15 = arith.constant dense<0.000000e+00> : vector<8x128xf32>
    %40 = tpu.matmul %38, %4, %cst_15 {dimension_numbers = #tpu.dot_dimension_numbers<[1], [0], [0], [1], [0, 0, 1, 1], [], []>} : vector<8x32xf32>, vector<32x128xf32>, vector<8x128xf32> -> vector<8x128xf32>
    %41 = arith.addf %39, %40 : vector<8x128xf32>
    %42 = vector.extract_strided_slice %41 {offsets = [0, 0], sizes = [8, 32], strides = [1, 1]} : vector<8x128xf32> to vector<8x32xf32>
    %43 = arith.negf %42 : vector<8x32xf32>
    %44 = math.exp %43 : vector<8x32xf32>
    %cst_16 = arith.constant 1.000000e+00 : f32
    %45 = vector.broadcast %cst_16 : f32 to vector<8x32xf32>
    %46 = arith.addf %45, %44 : vector<8x32xf32>
    %47 = arith.divf %45, %46 : vector<8x32xf32>
    %48 = vector.extract_strided_slice %41 {offsets = [0, 32], sizes = [8, 32], strides = [1, 1]} : vector<8x128xf32> to vector<8x32xf32>
    %49 = arith.negf %48 : vector<8x32xf32>
    %50 = math.exp %49 : vector<8x32xf32>
    %cst_17 = arith.constant 1.000000e+00 : f32
    %51 = vector.broadcast %cst_17 : f32 to vector<8x32xf32>
    %52 = arith.addf %51, %50 : vector<8x32xf32>
    %53 = arith.divf %51, %52 : vector<8x32xf32>
    %54 = vector.extract_strided_slice %41 {offsets = [0, 64], sizes = [8, 32], strides = [1, 1]} : vector<8x128xf32> to vector<8x32xf32>
    %55 = math.tanh %54 : vector<8x32xf32>
    %56 = vector.extract_strided_slice %41 {offsets = [0, 96], sizes = [8, 32], strides = [1, 1]} : vector<8x128xf32> to vector<8x32xf32>
    %57 = arith.negf %56 : vector<8x32xf32>
    %58 = math.exp %57 : vector<8x32xf32>
    %cst_18 = arith.constant 1.000000e+00 : f32
    %59 = vector.broadcast %cst_18 : f32 to vector<8x32xf32>
    %60 = arith.addf %59, %58 : vector<8x32xf32>
    %61 = arith.divf %59, %60 : vector<8x32xf32>
    %62 = arith.mulf %53, %36 : vector<8x32xf32>
    %63 = arith.mulf %47, %55 : vector<8x32xf32>
    %64 = arith.addf %62, %63 : vector<8x32xf32>
    %65 = math.tanh %64 : vector<8x32xf32>
    %66 = arith.mulf %61, %65 : vector<8x32xf32>
    %67 = vector.extract_strided_slice %8 {offsets = [16, 0], sizes = [8, 128], strides = [1, 1]} : vector<64x128xf32> to vector<8x128xf32>
    %cst_19 = arith.constant dense<0.000000e+00> : vector<8x128xf32>
    %68 = tpu.matmul %66, %4, %cst_19 {dimension_numbers = #tpu.dot_dimension_numbers<[1], [0], [0], [1], [0, 0, 1, 1], [], []>} : vector<8x32xf32>, vector<32x128xf32>, vector<8x128xf32> -> vector<8x128xf32>
    %69 = arith.addf %67, %68 : vector<8x128xf32>
    %70 = vector.extract_strided_slice %69 {offsets = [0, 0], sizes = [8, 32], strides = [1, 1]} : vector<8x128xf32> to vector<8x32xf32>
    %71 = arith.negf %70 : vector<8x32xf32>
    %72 = math.exp %71 : vector<8x32xf32>
    %cst_20 = arith.constant 1.000000e+00 : f32
    %73 = vector.broadcast %cst_20 : f32 to vector<8x32xf32>
    %74 = arith.addf %73, %72 : vector<8x32xf32>
    %75 = arith.divf %73, %74 : vector<8x32xf32>
    %76 = vector.extract_strided_slice %69 {offsets = [0, 32], sizes = [8, 32], strides = [1, 1]} : vector<8x128xf32> to vector<8x32xf32>
    %77 = arith.negf %76 : vector<8x32xf32>
    %78 = math.exp %77 : vector<8x32xf32>
    %cst_21 = arith.constant 1.000000e+00 : f32
    %79 = vector.broadcast %cst_21 : f32 to vector<8x32xf32>
    %80 = arith.addf %79, %78 : vector<8x32xf32>
    %81 = arith.divf %79, %80 : vector<8x32xf32>
    %82 = vector.extract_strided_slice %69 {offsets = [0, 64], sizes = [8, 32], strides = [1, 1]} : vector<8x128xf32> to vector<8x32xf32>
    %83 = math.tanh %82 : vector<8x32xf32>
    %84 = vector.extract_strided_slice %69 {offsets = [0, 96], sizes = [8, 32], strides = [1, 1]} : vector<8x128xf32> to vector<8x32xf32>
    %85 = arith.negf %84 : vector<8x32xf32>
    %86 = math.exp %85 : vector<8x32xf32>
    %cst_22 = arith.constant 1.000000e+00 : f32
    %87 = vector.broadcast %cst_22 : f32 to vector<8x32xf32>
    %88 = arith.addf %87, %86 : vector<8x32xf32>
    %89 = arith.divf %87, %88 : vector<8x32xf32>
    %90 = arith.mulf %81, %64 : vector<8x32xf32>
    %91 = arith.mulf %75, %83 : vector<8x32xf32>
    %92 = arith.addf %90, %91 : vector<8x32xf32>
    %93 = math.tanh %92 : vector<8x32xf32>
    %94 = arith.mulf %89, %93 : vector<8x32xf32>
    %95 = vector.extract_strided_slice %8 {offsets = [24, 0], sizes = [8, 128], strides = [1, 1]} : vector<64x128xf32> to vector<8x128xf32>
    %cst_23 = arith.constant dense<0.000000e+00> : vector<8x128xf32>
    %96 = tpu.matmul %94, %4, %cst_23 {dimension_numbers = #tpu.dot_dimension_numbers<[1], [0], [0], [1], [0, 0, 1, 1], [], []>} : vector<8x32xf32>, vector<32x128xf32>, vector<8x128xf32> -> vector<8x128xf32>
    %97 = arith.addf %95, %96 : vector<8x128xf32>
    %98 = vector.extract_strided_slice %97 {offsets = [0, 0], sizes = [8, 32], strides = [1, 1]} : vector<8x128xf32> to vector<8x32xf32>
    %99 = arith.negf %98 : vector<8x32xf32>
    %100 = math.exp %99 : vector<8x32xf32>
    %cst_24 = arith.constant 1.000000e+00 : f32
    %101 = vector.broadcast %cst_24 : f32 to vector<8x32xf32>
    %102 = arith.addf %101, %100 : vector<8x32xf32>
    %103 = arith.divf %101, %102 : vector<8x32xf32>
    %104 = vector.extract_strided_slice %97 {offsets = [0, 32], sizes = [8, 32], strides = [1, 1]} : vector<8x128xf32> to vector<8x32xf32>
    %105 = arith.negf %104 : vector<8x32xf32>
    %106 = math.exp %105 : vector<8x32xf32>
    %cst_25 = arith.constant 1.000000e+00 : f32
    %107 = vector.broadcast %cst_25 : f32 to vector<8x32xf32>
    %108 = arith.addf %107, %106 : vector<8x32xf32>
    %109 = arith.divf %107, %108 : vector<8x32xf32>
    %110 = vector.extract_strided_slice %97 {offsets = [0, 64], sizes = [8, 32], strides = [1, 1]} : vector<8x128xf32> to vector<8x32xf32>
    %111 = math.tanh %110 : vector<8x32xf32>
    %112 = vector.extract_strided_slice %97 {offsets = [0, 96], sizes = [8, 32], strides = [1, 1]} : vector<8x128xf32> to vector<8x32xf32>
    %113 = arith.negf %112 : vector<8x32xf32>
    %114 = math.exp %113 : vector<8x32xf32>
    %cst_26 = arith.constant 1.000000e+00 : f32
    %115 = vector.broadcast %cst_26 : f32 to vector<8x32xf32>
    %116 = arith.addf %115, %114 : vector<8x32xf32>
    %117 = arith.divf %115, %116 : vector<8x32xf32>
    %118 = arith.mulf %109, %92 : vector<8x32xf32>
    %119 = arith.mulf %103, %111 : vector<8x32xf32>
    %120 = arith.addf %118, %119 : vector<8x32xf32>
    %121 = math.tanh %120 : vector<8x32xf32>
    %122 = arith.mulf %117, %121 : vector<8x32xf32>
    %123 = vector.extract_strided_slice %8 {offsets = [32, 0], sizes = [8, 128], strides = [1, 1]} : vector<64x128xf32> to vector<8x128xf32>
    %cst_27 = arith.constant dense<0.000000e+00> : vector<8x128xf32>
    %124 = tpu.matmul %122, %4, %cst_27 {dimension_numbers = #tpu.dot_dimension_numbers<[1], [0], [0], [1], [0, 0, 1, 1], [], []>} : vector<8x32xf32>, vector<32x128xf32>, vector<8x128xf32> -> vector<8x128xf32>
    %125 = arith.addf %123, %124 : vector<8x128xf32>
    %126 = vector.extract_strided_slice %125 {offsets = [0, 0], sizes = [8, 32], strides = [1, 1]} : vector<8x128xf32> to vector<8x32xf32>
    %127 = arith.negf %126 : vector<8x32xf32>
    %128 = math.exp %127 : vector<8x32xf32>
    %cst_28 = arith.constant 1.000000e+00 : f32
    %129 = vector.broadcast %cst_28 : f32 to vector<8x32xf32>
    %130 = arith.addf %129, %128 : vector<8x32xf32>
    %131 = arith.divf %129, %130 : vector<8x32xf32>
    %132 = vector.extract_strided_slice %125 {offsets = [0, 32], sizes = [8, 32], strides = [1, 1]} : vector<8x128xf32> to vector<8x32xf32>
    %133 = arith.negf %132 : vector<8x32xf32>
    %134 = math.exp %133 : vector<8x32xf32>
    %cst_29 = arith.constant 1.000000e+00 : f32
    %135 = vector.broadcast %cst_29 : f32 to vector<8x32xf32>
    %136 = arith.addf %135, %134 : vector<8x32xf32>
    %137 = arith.divf %135, %136 : vector<8x32xf32>
    %138 = vector.extract_strided_slice %125 {offsets = [0, 64], sizes = [8, 32], strides = [1, 1]} : vector<8x128xf32> to vector<8x32xf32>
    %139 = math.tanh %138 : vector<8x32xf32>
    %140 = vector.extract_strided_slice %125 {offsets = [0, 96], sizes = [8, 32], strides = [1, 1]} : vector<8x128xf32> to vector<8x32xf32>
    %141 = arith.negf %140 : vector<8x32xf32>
    %142 = math.exp %141 : vector<8x32xf32>
    %cst_30 = arith.constant 1.000000e+00 : f32
    %143 = vector.broadcast %cst_30 : f32 to vector<8x32xf32>
    %144 = arith.addf %143, %142 : vector<8x32xf32>
    %145 = arith.divf %143, %144 : vector<8x32xf32>
    %146 = arith.mulf %137, %120 : vector<8x32xf32>
    %147 = arith.mulf %131, %139 : vector<8x32xf32>
    %148 = arith.addf %146, %147 : vector<8x32xf32>
    %149 = math.tanh %148 : vector<8x32xf32>
    %150 = arith.mulf %145, %149 : vector<8x32xf32>
    %151 = vector.extract_strided_slice %8 {offsets = [40, 0], sizes = [8, 128], strides = [1, 1]} : vector<64x128xf32> to vector<8x128xf32>
    %cst_31 = arith.constant dense<0.000000e+00> : vector<8x128xf32>
    %152 = tpu.matmul %150, %4, %cst_31 {dimension_numbers = #tpu.dot_dimension_numbers<[1], [0], [0], [1], [0, 0, 1, 1], [], []>} : vector<8x32xf32>, vector<32x128xf32>, vector<8x128xf32> -> vector<8x128xf32>
    %153 = arith.addf %151, %152 : vector<8x128xf32>
    %154 = vector.extract_strided_slice %153 {offsets = [0, 0], sizes = [8, 32], strides = [1, 1]} : vector<8x128xf32> to vector<8x32xf32>
    %155 = arith.negf %154 : vector<8x32xf32>
    %156 = math.exp %155 : vector<8x32xf32>
    %cst_32 = arith.constant 1.000000e+00 : f32
    %157 = vector.broadcast %cst_32 : f32 to vector<8x32xf32>
    %158 = arith.addf %157, %156 : vector<8x32xf32>
    %159 = arith.divf %157, %158 : vector<8x32xf32>
    %160 = vector.extract_strided_slice %153 {offsets = [0, 32], sizes = [8, 32], strides = [1, 1]} : vector<8x128xf32> to vector<8x32xf32>
    %161 = arith.negf %160 : vector<8x32xf32>
    %162 = math.exp %161 : vector<8x32xf32>
    %cst_33 = arith.constant 1.000000e+00 : f32
    %163 = vector.broadcast %cst_33 : f32 to vector<8x32xf32>
    %164 = arith.addf %163, %162 : vector<8x32xf32>
    %165 = arith.divf %163, %164 : vector<8x32xf32>
    %166 = vector.extract_strided_slice %153 {offsets = [0, 64], sizes = [8, 32], strides = [1, 1]} : vector<8x128xf32> to vector<8x32xf32>
    %167 = math.tanh %166 : vector<8x32xf32>
    %168 = vector.extract_strided_slice %153 {offsets = [0, 96], sizes = [8, 32], strides = [1, 1]} : vector<8x128xf32> to vector<8x32xf32>
    %169 = arith.negf %168 : vector<8x32xf32>
    %170 = math.exp %169 : vector<8x32xf32>
    %cst_34 = arith.constant 1.000000e+00 : f32
    %171 = vector.broadcast %cst_34 : f32 to vector<8x32xf32>
    %172 = arith.addf %171, %170 : vector<8x32xf32>
    %173 = arith.divf %171, %172 : vector<8x32xf32>
    %174 = arith.mulf %165, %148 : vector<8x32xf32>
    %175 = arith.mulf %159, %167 : vector<8x32xf32>
    %176 = arith.addf %174, %175 : vector<8x32xf32>
    %177 = math.tanh %176 : vector<8x32xf32>
    %178 = arith.mulf %173, %177 : vector<8x32xf32>
    %179 = vector.extract_strided_slice %8 {offsets = [48, 0], sizes = [8, 128], strides = [1, 1]} : vector<64x128xf32> to vector<8x128xf32>
    %cst_35 = arith.constant dense<0.000000e+00> : vector<8x128xf32>
    %180 = tpu.matmul %178, %4, %cst_35 {dimension_numbers = #tpu.dot_dimension_numbers<[1], [0], [0], [1], [0, 0, 1, 1], [], []>} : vector<8x32xf32>, vector<32x128xf32>, vector<8x128xf32> -> vector<8x128xf32>
    %181 = arith.addf %179, %180 : vector<8x128xf32>
    %182 = vector.extract_strided_slice %181 {offsets = [0, 0], sizes = [8, 32], strides = [1, 1]} : vector<8x128xf32> to vector<8x32xf32>
    %183 = arith.negf %182 : vector<8x32xf32>
    %184 = math.exp %183 : vector<8x32xf32>
    %cst_36 = arith.constant 1.000000e+00 : f32
    %185 = vector.broadcast %cst_36 : f32 to vector<8x32xf32>
    %186 = arith.addf %185, %184 : vector<8x32xf32>
    %187 = arith.divf %185, %186 : vector<8x32xf32>
    %188 = vector.extract_strided_slice %181 {offsets = [0, 32], sizes = [8, 32], strides = [1, 1]} : vector<8x128xf32> to vector<8x32xf32>
    %189 = arith.negf %188 : vector<8x32xf32>
    %190 = math.exp %189 : vector<8x32xf32>
    %cst_37 = arith.constant 1.000000e+00 : f32
    %191 = vector.broadcast %cst_37 : f32 to vector<8x32xf32>
    %192 = arith.addf %191, %190 : vector<8x32xf32>
    %193 = arith.divf %191, %192 : vector<8x32xf32>
    %194 = vector.extract_strided_slice %181 {offsets = [0, 64], sizes = [8, 32], strides = [1, 1]} : vector<8x128xf32> to vector<8x32xf32>
    %195 = math.tanh %194 : vector<8x32xf32>
    %196 = vector.extract_strided_slice %181 {offsets = [0, 96], sizes = [8, 32], strides = [1, 1]} : vector<8x128xf32> to vector<8x32xf32>
    %197 = arith.negf %196 : vector<8x32xf32>
    %198 = math.exp %197 : vector<8x32xf32>
    %cst_38 = arith.constant 1.000000e+00 : f32
    %199 = vector.broadcast %cst_38 : f32 to vector<8x32xf32>
    %200 = arith.addf %199, %198 : vector<8x32xf32>
    %201 = arith.divf %199, %200 : vector<8x32xf32>
    %202 = arith.mulf %193, %176 : vector<8x32xf32>
    %203 = arith.mulf %187, %195 : vector<8x32xf32>
    %204 = arith.addf %202, %203 : vector<8x32xf32>
    %205 = math.tanh %204 : vector<8x32xf32>
    %206 = arith.mulf %201, %205 : vector<8x32xf32>
    %207 = vector.extract_strided_slice %8 {offsets = [56, 0], sizes = [8, 128], strides = [1, 1]} : vector<64x128xf32> to vector<8x128xf32>
    %cst_39 = arith.constant dense<0.000000e+00> : vector<8x128xf32>
    %208 = tpu.matmul %206, %4, %cst_39 {dimension_numbers = #tpu.dot_dimension_numbers<[1], [0], [0], [1], [0, 0, 1, 1], [], []>} : vector<8x32xf32>, vector<32x128xf32>, vector<8x128xf32> -> vector<8x128xf32>
    %209 = arith.addf %207, %208 : vector<8x128xf32>
    %210 = vector.extract_strided_slice %209 {offsets = [0, 0], sizes = [8, 32], strides = [1, 1]} : vector<8x128xf32> to vector<8x32xf32>
    %211 = arith.negf %210 : vector<8x32xf32>
    %212 = math.exp %211 : vector<8x32xf32>
    %cst_40 = arith.constant 1.000000e+00 : f32
    %213 = vector.broadcast %cst_40 : f32 to vector<8x32xf32>
    %214 = arith.addf %213, %212 : vector<8x32xf32>
    %215 = arith.divf %213, %214 : vector<8x32xf32>
    %216 = vector.extract_strided_slice %209 {offsets = [0, 32], sizes = [8, 32], strides = [1, 1]} : vector<8x128xf32> to vector<8x32xf32>
    %217 = arith.negf %216 : vector<8x32xf32>
    %218 = math.exp %217 : vector<8x32xf32>
    %cst_41 = arith.constant 1.000000e+00 : f32
    %219 = vector.broadcast %cst_41 : f32 to vector<8x32xf32>
    %220 = arith.addf %219, %218 : vector<8x32xf32>
    %221 = arith.divf %219, %220 : vector<8x32xf32>
    %222 = vector.extract_strided_slice %209 {offsets = [0, 64], sizes = [8, 32], strides = [1, 1]} : vector<8x128xf32> to vector<8x32xf32>
    %223 = math.tanh %222 : vector<8x32xf32>
    %224 = vector.extract_strided_slice %209 {offsets = [0, 96], sizes = [8, 32], strides = [1, 1]} : vector<8x128xf32> to vector<8x32xf32>
    %225 = arith.negf %224 : vector<8x32xf32>
    %226 = math.exp %225 : vector<8x32xf32>
    %cst_42 = arith.constant 1.000000e+00 : f32
    %227 = vector.broadcast %cst_42 : f32 to vector<8x32xf32>
    %228 = arith.addf %227, %226 : vector<8x32xf32>
    %229 = arith.divf %227, %228 : vector<8x32xf32>
    %230 = arith.mulf %221, %204 : vector<8x32xf32>
    %231 = arith.mulf %215, %223 : vector<8x32xf32>
    %232 = arith.addf %230, %231 : vector<8x32xf32>
    %233 = math.tanh %232 : vector<8x32xf32>
    %234 = arith.mulf %229, %233 : vector<8x32xf32>
    %235 = tpu.concatenate %38, %66, %94, %122, %150, %178, %206, %234 in 0 : vector<8x32xf32>, vector<8x32xf32>, vector<8x32xf32>, vector<8x32xf32>, vector<8x32xf32>, vector<8x32xf32>, vector<8x32xf32>, vector<8x32xf32> -> vector<64x32xf32>
    %c0_43 = arith.constant 0 : index
    %c0_44 = arith.constant 0 : index
    %236 = vector.load %arg5[%c0_43, %c0_44] : memref<32x128xf32, #tpu.memory_space<vmem>>, vector<32x128xf32>
    %c0_45 = arith.constant 0 : index
    %c0_46 = arith.constant 0 : index
    %237 = vector.load %arg6[%c0_45, %c0_46] : memref<32x128xf32, #tpu.memory_space<vmem>>, vector<32x128xf32>
    %c0_47 = arith.constant 0 : index
    %c0_48 = arith.constant 0 : index
    %238 = vector.load %arg7[%c0_47, %c0_48] : memref<1x128xf32, #tpu.memory_space<vmem>>, vector<1x128xf32>
    %cst_49 = arith.constant dense<0.000000e+00> : vector<64x128xf32>
    %239 = tpu.matmul %235, %236, %cst_49 {dimension_numbers = #tpu.dot_dimension_numbers<[1], [0], [0], [1], [0, 0, 1, 1], [], []>} : vector<64x32xf32>, vector<32x128xf32>, vector<64x128xf32> -> vector<64x128xf32>
    %240 = vector.broadcast %238 : vector<1x128xf32> to vector<64x128xf32>
    %241 = arith.addf %239, %240 : vector<64x128xf32>
    %cst_50 = arith.constant 0.000000e+00 : f32
    %242 = vector.broadcast %cst_50 : f32 to vector<8x32xf32>
    %cst_51 = arith.constant 0.000000e+00 : f32
    %243 = vector.broadcast %cst_51 : f32 to vector<8x32xf32>
    %244 = vector.extract_strided_slice %241 {offsets = [0, 0], sizes = [8, 128], strides = [1, 1]} : vector<64x128xf32> to vector<8x128xf32>
    %cst_52 = arith.constant dense<0.000000e+00> : vector<8x128xf32>
    %245 = tpu.matmul %242, %237, %cst_52 {dimension_numbers = #tpu.dot_dimension_numbers<[1], [0], [0], [1], [0, 0, 1, 1], [], []>} : vector<8x32xf32>, vector<32x128xf32>, vector<8x128xf32> -> vector<8x128xf32>
    %246 = arith.addf %244, %245 : vector<8x128xf32>
    %247 = vector.extract_strided_slice %246 {offsets = [0, 0], sizes = [8, 32], strides = [1, 1]} : vector<8x128xf32> to vector<8x32xf32>
    %248 = arith.negf %247 : vector<8x32xf32>
    %249 = math.exp %248 : vector<8x32xf32>
    %cst_53 = arith.constant 1.000000e+00 : f32
    %250 = vector.broadcast %cst_53 : f32 to vector<8x32xf32>
    %251 = arith.addf %250, %249 : vector<8x32xf32>
    %252 = arith.divf %250, %251 : vector<8x32xf32>
    %253 = vector.extract_strided_slice %246 {offsets = [0, 32], sizes = [8, 32], strides = [1, 1]} : vector<8x128xf32> to vector<8x32xf32>
    %254 = arith.negf %253 : vector<8x32xf32>
    %255 = math.exp %254 : vector<8x32xf32>
    %cst_54 = arith.constant 1.000000e+00 : f32
    %256 = vector.broadcast %cst_54 : f32 to vector<8x32xf32>
    %257 = arith.addf %256, %255 : vector<8x32xf32>
    %258 = arith.divf %256, %257 : vector<8x32xf32>
    %259 = vector.extract_strided_slice %246 {offsets = [0, 64], sizes = [8, 32], strides = [1, 1]} : vector<8x128xf32> to vector<8x32xf32>
    %260 = math.tanh %259 : vector<8x32xf32>
    %261 = vector.extract_strided_slice %246 {offsets = [0, 96], sizes = [8, 32], strides = [1, 1]} : vector<8x128xf32> to vector<8x32xf32>
    %262 = arith.negf %261 : vector<8x32xf32>
    %263 = math.exp %262 : vector<8x32xf32>
    %cst_55 = arith.constant 1.000000e+00 : f32
    %264 = vector.broadcast %cst_55 : f32 to vector<8x32xf32>
    %265 = arith.addf %264, %263 : vector<8x32xf32>
    %266 = arith.divf %264, %265 : vector<8x32xf32>
    %267 = arith.mulf %258, %243 : vector<8x32xf32>
    %268 = arith.mulf %252, %260 : vector<8x32xf32>
    %269 = arith.addf %267, %268 : vector<8x32xf32>
    %270 = math.tanh %269 : vector<8x32xf32>
    %271 = arith.mulf %266, %270 : vector<8x32xf32>
    %c0_i32 = arith.constant 0 : i32
    %272 = arith.cmpi eq, %0, %c0_i32 : i32
    %273 = arith.select %272, %271, %2 : vector<8x32xf32>
    %274 = vector.extract_strided_slice %241 {offsets = [8, 0], sizes = [8, 128], strides = [1, 1]} : vector<64x128xf32> to vector<8x128xf32>
    %cst_56 = arith.constant dense<0.000000e+00> : vector<8x128xf32>
    %275 = tpu.matmul %271, %237, %cst_56 {dimension_numbers = #tpu.dot_dimension_numbers<[1], [0], [0], [1], [0, 0, 1, 1], [], []>} : vector<8x32xf32>, vector<32x128xf32>, vector<8x128xf32> -> vector<8x128xf32>
    %276 = arith.addf %274, %275 : vector<8x128xf32>
    %277 = vector.extract_strided_slice %276 {offsets = [0, 0], sizes = [8, 32], strides = [1, 1]} : vector<8x128xf32> to vector<8x32xf32>
    %278 = arith.negf %277 : vector<8x32xf32>
    %279 = math.exp %278 : vector<8x32xf32>
    %cst_57 = arith.constant 1.000000e+00 : f32
    %280 = vector.broadcast %cst_57 : f32 to vector<8x32xf32>
    %281 = arith.addf %280, %279 : vector<8x32xf32>
    %282 = arith.divf %280, %281 : vector<8x32xf32>
    %283 = vector.extract_strided_slice %276 {offsets = [0, 32], sizes = [8, 32], strides = [1, 1]} : vector<8x128xf32> to vector<8x32xf32>
    %284 = arith.negf %283 : vector<8x32xf32>
    %285 = math.exp %284 : vector<8x32xf32>
    %cst_58 = arith.constant 1.000000e+00 : f32
    %286 = vector.broadcast %cst_58 : f32 to vector<8x32xf32>
    %287 = arith.addf %286, %285 : vector<8x32xf32>
    %288 = arith.divf %286, %287 : vector<8x32xf32>
    %289 = vector.extract_strided_slice %276 {offsets = [0, 64], sizes = [8, 32], strides = [1, 1]} : vector<8x128xf32> to vector<8x32xf32>
    %290 = math.tanh %289 : vector<8x32xf32>
    %291 = vector.extract_strided_slice %276 {offsets = [0, 96], sizes = [8, 32], strides = [1, 1]} : vector<8x128xf32> to vector<8x32xf32>
    %292 = arith.negf %291 : vector<8x32xf32>
    %293 = math.exp %292 : vector<8x32xf32>
    %cst_59 = arith.constant 1.000000e+00 : f32
    %294 = vector.broadcast %cst_59 : f32 to vector<8x32xf32>
    %295 = arith.addf %294, %293 : vector<8x32xf32>
    %296 = arith.divf %294, %295 : vector<8x32xf32>
    %297 = arith.mulf %288, %269 : vector<8x32xf32>
    %298 = arith.mulf %282, %290 : vector<8x32xf32>
    %299 = arith.addf %297, %298 : vector<8x32xf32>
    %300 = math.tanh %299 : vector<8x32xf32>
    %301 = arith.mulf %296, %300 : vector<8x32xf32>
    %c1_i32 = arith.constant 1 : i32
    %302 = arith.cmpi eq, %0, %c1_i32 : i32
    %303 = arith.select %302, %301, %273 : vector<8x32xf32>
    %304 = vector.extract_strided_slice %241 {offsets = [16, 0], sizes = [8, 128], strides = [1, 1]} : vector<64x128xf32> to vector<8x128xf32>
    %cst_60 = arith.constant dense<0.000000e+00> : vector<8x128xf32>
    %305 = tpu.matmul %301, %237, %cst_60 {dimension_numbers = #tpu.dot_dimension_numbers<[1], [0], [0], [1], [0, 0, 1, 1], [], []>} : vector<8x32xf32>, vector<32x128xf32>, vector<8x128xf32> -> vector<8x128xf32>
    %306 = arith.addf %304, %305 : vector<8x128xf32>
    %307 = vector.extract_strided_slice %306 {offsets = [0, 0], sizes = [8, 32], strides = [1, 1]} : vector<8x128xf32> to vector<8x32xf32>
    %308 = arith.negf %307 : vector<8x32xf32>
    %309 = math.exp %308 : vector<8x32xf32>
    %cst_61 = arith.constant 1.000000e+00 : f32
    %310 = vector.broadcast %cst_61 : f32 to vector<8x32xf32>
    %311 = arith.addf %310, %309 : vector<8x32xf32>
    %312 = arith.divf %310, %311 : vector<8x32xf32>
    %313 = vector.extract_strided_slice %306 {offsets = [0, 32], sizes = [8, 32], strides = [1, 1]} : vector<8x128xf32> to vector<8x32xf32>
    %314 = arith.negf %313 : vector<8x32xf32>
    %315 = math.exp %314 : vector<8x32xf32>
    %cst_62 = arith.constant 1.000000e+00 : f32
    %316 = vector.broadcast %cst_62 : f32 to vector<8x32xf32>
    %317 = arith.addf %316, %315 : vector<8x32xf32>
    %318 = arith.divf %316, %317 : vector<8x32xf32>
    %319 = vector.extract_strided_slice %306 {offsets = [0, 64], sizes = [8, 32], strides = [1, 1]} : vector<8x128xf32> to vector<8x32xf32>
    %320 = math.tanh %319 : vector<8x32xf32>
    %321 = vector.extract_strided_slice %306 {offsets = [0, 96], sizes = [8, 32], strides = [1, 1]} : vector<8x128xf32> to vector<8x32xf32>
    %322 = arith.negf %321 : vector<8x32xf32>
    %323 = math.exp %322 : vector<8x32xf32>
    %cst_63 = arith.constant 1.000000e+00 : f32
    %324 = vector.broadcast %cst_63 : f32 to vector<8x32xf32>
    %325 = arith.addf %324, %323 : vector<8x32xf32>
    %326 = arith.divf %324, %325 : vector<8x32xf32>
    %327 = arith.mulf %318, %299 : vector<8x32xf32>
    %328 = arith.mulf %312, %320 : vector<8x32xf32>
    %329 = arith.addf %327, %328 : vector<8x32xf32>
    %330 = math.tanh %329 : vector<8x32xf32>
    %331 = arith.mulf %326, %330 : vector<8x32xf32>
    %c2_i32 = arith.constant 2 : i32
    %332 = arith.cmpi eq, %0, %c2_i32 : i32
    %333 = arith.select %332, %331, %303 : vector<8x32xf32>
    %334 = vector.extract_strided_slice %241 {offsets = [24, 0], sizes = [8, 128], strides = [1, 1]} : vector<64x128xf32> to vector<8x128xf32>
    %cst_64 = arith.constant dense<0.000000e+00> : vector<8x128xf32>
    %335 = tpu.matmul %331, %237, %cst_64 {dimension_numbers = #tpu.dot_dimension_numbers<[1], [0], [0], [1], [0, 0, 1, 1], [], []>} : vector<8x32xf32>, vector<32x128xf32>, vector<8x128xf32> -> vector<8x128xf32>
    %336 = arith.addf %334, %335 : vector<8x128xf32>
    %337 = vector.extract_strided_slice %336 {offsets = [0, 0], sizes = [8, 32], strides = [1, 1]} : vector<8x128xf32> to vector<8x32xf32>
    %338 = arith.negf %337 : vector<8x32xf32>
    %339 = math.exp %338 : vector<8x32xf32>
    %cst_65 = arith.constant 1.000000e+00 : f32
    %340 = vector.broadcast %cst_65 : f32 to vector<8x32xf32>
    %341 = arith.addf %340, %339 : vector<8x32xf32>
    %342 = arith.divf %340, %341 : vector<8x32xf32>
    %343 = vector.extract_strided_slice %336 {offsets = [0, 32], sizes = [8, 32], strides = [1, 1]} : vector<8x128xf32> to vector<8x32xf32>
    %344 = arith.negf %343 : vector<8x32xf32>
    %345 = math.exp %344 : vector<8x32xf32>
    %cst_66 = arith.constant 1.000000e+00 : f32
    %346 = vector.broadcast %cst_66 : f32 to vector<8x32xf32>
    %347 = arith.addf %346, %345 : vector<8x32xf32>
    %348 = arith.divf %346, %347 : vector<8x32xf32>
    %349 = vector.extract_strided_slice %336 {offsets = [0, 64], sizes = [8, 32], strides = [1, 1]} : vector<8x128xf32> to vector<8x32xf32>
    %350 = math.tanh %349 : vector<8x32xf32>
    %351 = vector.extract_strided_slice %336 {offsets = [0, 96], sizes = [8, 32], strides = [1, 1]} : vector<8x128xf32> to vector<8x32xf32>
    %352 = arith.negf %351 : vector<8x32xf32>
    %353 = math.exp %352 : vector<8x32xf32>
    %cst_67 = arith.constant 1.000000e+00 : f32
    %354 = vector.broadcast %cst_67 : f32 to vector<8x32xf32>
    %355 = arith.addf %354, %353 : vector<8x32xf32>
    %356 = arith.divf %354, %355 : vector<8x32xf32>
    %357 = arith.mulf %348, %329 : vector<8x32xf32>
    %358 = arith.mulf %342, %350 : vector<8x32xf32>
    %359 = arith.addf %357, %358 : vector<8x32xf32>
    %360 = math.tanh %359 : vector<8x32xf32>
    %361 = arith.mulf %356, %360 : vector<8x32xf32>
    %c3_i32 = arith.constant 3 : i32
    %362 = arith.cmpi eq, %0, %c3_i32 : i32
    %363 = arith.select %362, %361, %333 : vector<8x32xf32>
    %364 = vector.extract_strided_slice %241 {offsets = [32, 0], sizes = [8, 128], strides = [1, 1]} : vector<64x128xf32> to vector<8x128xf32>
    %cst_68 = arith.constant dense<0.000000e+00> : vector<8x128xf32>
    %365 = tpu.matmul %361, %237, %cst_68 {dimension_numbers = #tpu.dot_dimension_numbers<[1], [0], [0], [1], [0, 0, 1, 1], [], []>} : vector<8x32xf32>, vector<32x128xf32>, vector<8x128xf32> -> vector<8x128xf32>
    %366 = arith.addf %364, %365 : vector<8x128xf32>
    %367 = vector.extract_strided_slice %366 {offsets = [0, 0], sizes = [8, 32], strides = [1, 1]} : vector<8x128xf32> to vector<8x32xf32>
    %368 = arith.negf %367 : vector<8x32xf32>
    %369 = math.exp %368 : vector<8x32xf32>
    %cst_69 = arith.constant 1.000000e+00 : f32
    %370 = vector.broadcast %cst_69 : f32 to vector<8x32xf32>
    %371 = arith.addf %370, %369 : vector<8x32xf32>
    %372 = arith.divf %370, %371 : vector<8x32xf32>
    %373 = vector.extract_strided_slice %366 {offsets = [0, 32], sizes = [8, 32], strides = [1, 1]} : vector<8x128xf32> to vector<8x32xf32>
    %374 = arith.negf %373 : vector<8x32xf32>
    %375 = math.exp %374 : vector<8x32xf32>
    %cst_70 = arith.constant 1.000000e+00 : f32
    %376 = vector.broadcast %cst_70 : f32 to vector<8x32xf32>
    %377 = arith.addf %376, %375 : vector<8x32xf32>
    %378 = arith.divf %376, %377 : vector<8x32xf32>
    %379 = vector.extract_strided_slice %366 {offsets = [0, 64], sizes = [8, 32], strides = [1, 1]} : vector<8x128xf32> to vector<8x32xf32>
    %380 = math.tanh %379 : vector<8x32xf32>
    %381 = vector.extract_strided_slice %366 {offsets = [0, 96], sizes = [8, 32], strides = [1, 1]} : vector<8x128xf32> to vector<8x32xf32>
    %382 = arith.negf %381 : vector<8x32xf32>
    %383 = math.exp %382 : vector<8x32xf32>
    %cst_71 = arith.constant 1.000000e+00 : f32
    %384 = vector.broadcast %cst_71 : f32 to vector<8x32xf32>
    %385 = arith.addf %384, %383 : vector<8x32xf32>
    %386 = arith.divf %384, %385 : vector<8x32xf32>
    %387 = arith.mulf %378, %359 : vector<8x32xf32>
    %388 = arith.mulf %372, %380 : vector<8x32xf32>
    %389 = arith.addf %387, %388 : vector<8x32xf32>
    %390 = math.tanh %389 : vector<8x32xf32>
    %391 = arith.mulf %386, %390 : vector<8x32xf32>
    %c4_i32 = arith.constant 4 : i32
    %392 = arith.cmpi eq, %0, %c4_i32 : i32
    %393 = arith.select %392, %391, %363 : vector<8x32xf32>
    %394 = vector.extract_strided_slice %241 {offsets = [40, 0], sizes = [8, 128], strides = [1, 1]} : vector<64x128xf32> to vector<8x128xf32>
    %cst_72 = arith.constant dense<0.000000e+00> : vector<8x128xf32>
    %395 = tpu.matmul %391, %237, %cst_72 {dimension_numbers = #tpu.dot_dimension_numbers<[1], [0], [0], [1], [0, 0, 1, 1], [], []>} : vector<8x32xf32>, vector<32x128xf32>, vector<8x128xf32> -> vector<8x128xf32>
    %396 = arith.addf %394, %395 : vector<8x128xf32>
    %397 = vector.extract_strided_slice %396 {offsets = [0, 0], sizes = [8, 32], strides = [1, 1]} : vector<8x128xf32> to vector<8x32xf32>
    %398 = arith.negf %397 : vector<8x32xf32>
    %399 = math.exp %398 : vector<8x32xf32>
    %cst_73 = arith.constant 1.000000e+00 : f32
    %400 = vector.broadcast %cst_73 : f32 to vector<8x32xf32>
    %401 = arith.addf %400, %399 : vector<8x32xf32>
    %402 = arith.divf %400, %401 : vector<8x32xf32>
    %403 = vector.extract_strided_slice %396 {offsets = [0, 32], sizes = [8, 32], strides = [1, 1]} : vector<8x128xf32> to vector<8x32xf32>
    %404 = arith.negf %403 : vector<8x32xf32>
    %405 = math.exp %404 : vector<8x32xf32>
    %cst_74 = arith.constant 1.000000e+00 : f32
    %406 = vector.broadcast %cst_74 : f32 to vector<8x32xf32>
    %407 = arith.addf %406, %405 : vector<8x32xf32>
    %408 = arith.divf %406, %407 : vector<8x32xf32>
    %409 = vector.extract_strided_slice %396 {offsets = [0, 64], sizes = [8, 32], strides = [1, 1]} : vector<8x128xf32> to vector<8x32xf32>
    %410 = math.tanh %409 : vector<8x32xf32>
    %411 = vector.extract_strided_slice %396 {offsets = [0, 96], sizes = [8, 32], strides = [1, 1]} : vector<8x128xf32> to vector<8x32xf32>
    %412 = arith.negf %411 : vector<8x32xf32>
    %413 = math.exp %412 : vector<8x32xf32>
    %cst_75 = arith.constant 1.000000e+00 : f32
    %414 = vector.broadcast %cst_75 : f32 to vector<8x32xf32>
    %415 = arith.addf %414, %413 : vector<8x32xf32>
    %416 = arith.divf %414, %415 : vector<8x32xf32>
    %417 = arith.mulf %408, %389 : vector<8x32xf32>
    %418 = arith.mulf %402, %410 : vector<8x32xf32>
    %419 = arith.addf %417, %418 : vector<8x32xf32>
    %420 = math.tanh %419 : vector<8x32xf32>
    %421 = arith.mulf %416, %420 : vector<8x32xf32>
    %c5_i32 = arith.constant 5 : i32
    %422 = arith.cmpi eq, %0, %c5_i32 : i32
    %423 = arith.select %422, %421, %393 : vector<8x32xf32>
    %424 = vector.extract_strided_slice %241 {offsets = [48, 0], sizes = [8, 128], strides = [1, 1]} : vector<64x128xf32> to vector<8x128xf32>
    %cst_76 = arith.constant dense<0.000000e+00> : vector<8x128xf32>
    %425 = tpu.matmul %421, %237, %cst_76 {dimension_numbers = #tpu.dot_dimension_numbers<[1], [0], [0], [1], [0, 0, 1, 1], [], []>} : vector<8x32xf32>, vector<32x128xf32>, vector<8x128xf32> -> vector<8x128xf32>
    %426 = arith.addf %424, %425 : vector<8x128xf32>
    %427 = vector.extract_strided_slice %426 {offsets = [0, 0], sizes = [8, 32], strides = [1, 1]} : vector<8x128xf32> to vector<8x32xf32>
    %428 = arith.negf %427 : vector<8x32xf32>
    %429 = math.exp %428 : vector<8x32xf32>
    %cst_77 = arith.constant 1.000000e+00 : f32
    %430 = vector.broadcast %cst_77 : f32 to vector<8x32xf32>
    %431 = arith.addf %430, %429 : vector<8x32xf32>
    %432 = arith.divf %430, %431 : vector<8x32xf32>
    %433 = vector.extract_strided_slice %426 {offsets = [0, 32], sizes = [8, 32], strides = [1, 1]} : vector<8x128xf32> to vector<8x32xf32>
    %434 = arith.negf %433 : vector<8x32xf32>
    %435 = math.exp %434 : vector<8x32xf32>
    %cst_78 = arith.constant 1.000000e+00 : f32
    %436 = vector.broadcast %cst_78 : f32 to vector<8x32xf32>
    %437 = arith.addf %436, %435 : vector<8x32xf32>
    %438 = arith.divf %436, %437 : vector<8x32xf32>
    %439 = vector.extract_strided_slice %426 {offsets = [0, 64], sizes = [8, 32], strides = [1, 1]} : vector<8x128xf32> to vector<8x32xf32>
    %440 = math.tanh %439 : vector<8x32xf32>
    %441 = vector.extract_strided_slice %426 {offsets = [0, 96], sizes = [8, 32], strides = [1, 1]} : vector<8x128xf32> to vector<8x32xf32>
    %442 = arith.negf %441 : vector<8x32xf32>
    %443 = math.exp %442 : vector<8x32xf32>
    %cst_79 = arith.constant 1.000000e+00 : f32
    %444 = vector.broadcast %cst_79 : f32 to vector<8x32xf32>
    %445 = arith.addf %444, %443 : vector<8x32xf32>
    %446 = arith.divf %444, %445 : vector<8x32xf32>
    %447 = arith.mulf %438, %419 : vector<8x32xf32>
    %448 = arith.mulf %432, %440 : vector<8x32xf32>
    %449 = arith.addf %447, %448 : vector<8x32xf32>
    %450 = math.tanh %449 : vector<8x32xf32>
    %451 = arith.mulf %446, %450 : vector<8x32xf32>
    %c6_i32 = arith.constant 6 : i32
    %452 = arith.cmpi eq, %0, %c6_i32 : i32
    %453 = arith.select %452, %451, %423 : vector<8x32xf32>
    %454 = vector.extract_strided_slice %241 {offsets = [56, 0], sizes = [8, 128], strides = [1, 1]} : vector<64x128xf32> to vector<8x128xf32>
    %cst_80 = arith.constant dense<0.000000e+00> : vector<8x128xf32>
    %455 = tpu.matmul %451, %237, %cst_80 {dimension_numbers = #tpu.dot_dimension_numbers<[1], [0], [0], [1], [0, 0, 1, 1], [], []>} : vector<8x32xf32>, vector<32x128xf32>, vector<8x128xf32> -> vector<8x128xf32>
    %456 = arith.addf %454, %455 : vector<8x128xf32>
    %457 = vector.extract_strided_slice %456 {offsets = [0, 0], sizes = [8, 32], strides = [1, 1]} : vector<8x128xf32> to vector<8x32xf32>
    %458 = arith.negf %457 : vector<8x32xf32>
    %459 = math.exp %458 : vector<8x32xf32>
    %cst_81 = arith.constant 1.000000e+00 : f32
    %460 = vector.broadcast %cst_81 : f32 to vector<8x32xf32>
    %461 = arith.addf %460, %459 : vector<8x32xf32>
    %462 = arith.divf %460, %461 : vector<8x32xf32>
    %463 = vector.extract_strided_slice %456 {offsets = [0, 32], sizes = [8, 32], strides = [1, 1]} : vector<8x128xf32> to vector<8x32xf32>
    %464 = arith.negf %463 : vector<8x32xf32>
    %465 = math.exp %464 : vector<8x32xf32>
    %cst_82 = arith.constant 1.000000e+00 : f32
    %466 = vector.broadcast %cst_82 : f32 to vector<8x32xf32>
    %467 = arith.addf %466, %465 : vector<8x32xf32>
    %468 = arith.divf %466, %467 : vector<8x32xf32>
    %469 = vector.extract_strided_slice %456 {offsets = [0, 64], sizes = [8, 32], strides = [1, 1]} : vector<8x128xf32> to vector<8x32xf32>
    %470 = math.tanh %469 : vector<8x32xf32>
    %471 = vector.extract_strided_slice %456 {offsets = [0, 96], sizes = [8, 32], strides = [1, 1]} : vector<8x128xf32> to vector<8x32xf32>
    %472 = arith.negf %471 : vector<8x32xf32>
    %473 = math.exp %472 : vector<8x32xf32>
    %cst_83 = arith.constant 1.000000e+00 : f32
    %474 = vector.broadcast %cst_83 : f32 to vector<8x32xf32>
    %475 = arith.addf %474, %473 : vector<8x32xf32>
    %476 = arith.divf %474, %475 : vector<8x32xf32>
    %477 = arith.mulf %468, %449 : vector<8x32xf32>
    %478 = arith.mulf %462, %470 : vector<8x32xf32>
    %479 = arith.addf %477, %478 : vector<8x32xf32>
    %480 = math.tanh %479 : vector<8x32xf32>
    %481 = arith.mulf %476, %480 : vector<8x32xf32>
    %c7_i32 = arith.constant 7 : i32
    %482 = arith.cmpi eq, %0, %c7_i32 : i32
    %483 = arith.select %482, %481, %453 : vector<8x32xf32>
    %c0_84 = arith.constant 0 : index
    %c0_85 = arith.constant 0 : index
    %484 = vector.load %arg8[%c0_84, %c0_85] : memref<32x128xf32, #tpu.memory_space<vmem>>, vector<32x128xf32>
    %cst_86 = arith.constant dense<0.000000e+00> : vector<8x128xf32>
    %485 = tpu.matmul %483, %484, %cst_86 {dimension_numbers = #tpu.dot_dimension_numbers<[1], [0], [0], [1], [0, 0, 1, 1], [], []>} : vector<8x32xf32>, vector<32x128xf32>, vector<8x128xf32> -> vector<8x128xf32>
    %c0_87 = arith.constant 0 : index
    %c0_88 = arith.constant 0 : index
    %486 = vector.load %arg9[%c0_87, %c0_88] : memref<1x128xf32, #tpu.memory_space<vmem>>, vector<1x128xf32>
    %487 = vector.broadcast %486 : vector<1x128xf32> to vector<8x128xf32>
    %488 = arith.addf %485, %487 : vector<8x128xf32>
    %cst_89 = arith.constant 0.000000e+00 : f32
    %489 = vector.broadcast %cst_89 : f32 to vector<8x128xf32>
    %490 = arith.maximumf %488, %489 : vector<8x128xf32>
    %c0_90 = arith.constant 0 : index
    %c0_91 = arith.constant 0 : index
    %491 = vector.load %arg10[%c0_90, %c0_91] : memref<128x4xf32, #tpu.memory_space<vmem>>, vector<128x4xf32>
    %cst_92 = arith.constant dense<0.000000e+00> : vector<8x4xf32>
    %492 = tpu.matmul %490, %491, %cst_92 {dimension_numbers = #tpu.dot_dimension_numbers<[1], [0], [0], [1], [0, 0, 1, 1], [], []>} : vector<8x128xf32>, vector<128x4xf32>, vector<8x4xf32> -> vector<8x4xf32>
    %c0_93 = arith.constant 0 : index
    %c0_94 = arith.constant 0 : index
    %493 = vector.load %arg11[%c0_93, %c0_94] : memref<1x4xf32, #tpu.memory_space<vmem>>, vector<1x4xf32>
    %494 = vector.broadcast %493 : vector<1x4xf32> to vector<8x4xf32>
    %495 = arith.addf %492, %494 : vector<8x4xf32>
    %c0_95 = arith.constant 0 : index
    %c0_96 = arith.constant 0 : index
    %496 = vector.load %arg12[%c0_95, %c0_96] : memref<8x4xf32, #tpu.memory_space<vmem>>, vector<8x4xf32>
    tpu.vector_store %arg12[%c0_95, %c0_96], %495 {strides = array<i32>} : memref<8x4xf32, #tpu.memory_space<vmem>>, vector<8x4xf32>,
    return
  }
}

</mosaic_0001>

<llo_original>
// kernel: tpu_custom_call.1
$region0: #{tpu_custom_call.1}
  #allocation0 [shape = 'u32[]', space=smem, size = 0x4, offset = 0x4, fixed_abs, tag = 'smem constant byte address 0x4 - core index']
  #allocation1 [shape = 'u32[144,128]{1,0:T(1,128)}', space=vmem, size = 0x12000, scoped, tag = 'internal scratch']
  #allocation2 [shape = 's32[1]{0:T(128)S(6)}', space=smem, size = 0x200, scoped, tag = 'scoped memory for tpu_custom_call.1']
  %s0 = inlined_call_operand.<no memory space> [shape: s32[1], index: 0, kind: input, shape index: {}]
  %s1 = inlined_call_operand.vmem [shape: f32[64,32], index: 1, kind: input, shape index: {}]
  %s2 = inlined_call_operand.vmem [shape: f32[32,128], index: 2, kind: input, shape index: {}]
  %s3 = inlined_call_operand.vmem [shape: f32[32,128], index: 3, kind: input, shape index: {}]
  %s4 = inlined_call_operand.vmem [shape: f32[1,128], index: 4, kind: input, shape index: {}]
  %s5 = inlined_call_operand.vmem [shape: f32[32,128], index: 5, kind: input, shape index: {}]
  %s6 = inlined_call_operand.vmem [shape: f32[32,128], index: 6, kind: input, shape index: {}]
  %s7 = inlined_call_operand.vmem [shape: f32[1,128], index: 7, kind: input, shape index: {}]
  %s8 = inlined_call_operand.vmem [shape: f32[32,128], index: 8, kind: input, shape index: {}]
  %s9 = inlined_call_operand.vmem [shape: f32[1,128], index: 9, kind: input, shape index: {}]
  %s10 = inlined_call_operand.vmem [shape: f32[128,4], index: 10, kind: input, shape index: {}]
  %s11 = inlined_call_operand.vmem [shape: f32[1,4], index: 11, kind: input, shape index: {}]
  %s12 = inlined_call_operand.vmem [shape: f32[8,4], index: 12, kind: output, shape index: {}]
  %s13 = sld [smem:[#allocation0]]
  $region58: #{tpu_custom_call.1} parent=0
    _
  %s15 = ssub.s32 1, %s13
  %s16 = scalar_select 0, %s15, %s13
  %17 = sst [smem:[#allocation2]] %s0
  // Predicated region
  $region2: #{tpu_custom_call.1} parent=0 // pred_check
    _
  $region3: #{tpu_custom_call.1} parent=0 // pred_check_branch
    %19 = sbr.rel (0) target = $region5
  $region4: #{tpu_custom_call.1} parent=0 // pred_region
    _
  $region5: #{tpu_custom_call.1} parent=0 // pred_fallthru
    _
  // Predicated region
  $region6: #{tpu_custom_call.1} parent=0 // pred_check
    _
  $region7: #{tpu_custom_call.1} parent=0 // pred_check_branch
    %21 = sbr.rel (0) target = $region9
  $region8: #{tpu_custom_call.1} parent=0 // pred_region
    _
  $region9: #{tpu_custom_call.1} parent=0 // pred_fallthru
    _
  // Predicated region
  $region10: #{tpu_custom_call.1} parent=0 // pred_check
    _
  $region11: #{tpu_custom_call.1} parent=0 // pred_check_branch
    %23 = sbr.rel (0) target = $region13
  $region12: #{tpu_custom_call.1} parent=0 // pred_region
    _
  $region13: #{tpu_custom_call.1} parent=0 // pred_fallthru
    _
  // Predicated region
  $region14: #{tpu_custom_call.1} parent=0 // pred_check
    _
  $region15: #{tpu_custom_call.1} parent=0 // pred_check_branch
    %25 = sbr.rel (0) target = $region17
  $region16: #{tpu_custom_call.1} parent=0 // pred_region
    _
  $region17: #{tpu_custom_call.1} parent=0 // pred_fallthru
    _
  // Predicated region
  $region18: #{tpu_custom_call.1} parent=0 // pred_check
    _
  $region19: #{tpu_custom_call.1} parent=0 // pred_check_branch
    %27 = sbr.rel (0) target = $region21
  $region20: #{tpu_custom_call.1} parent=0 // pred_region
    _
  $region21: #{tpu_custom_call.1} parent=0 // pred_fallthru
    _
  // Predicated region
  $region22: #{tpu_custom_call.1} parent=0 // pred_check
    _
  $region23: #{tpu_custom_call.1} parent=0 // pred_check_branch
    %29 = sbr.rel (0) target = $region25
  $region24: #{tpu_custom_call.1} parent=0 // pred_region
    _
  $region25: #{tpu_custom_call.1} parent=0 // pred_fallthru
    _
  // Predicated region
  $region26: #{tpu_custom_call.1} parent=0 // pred_check
    _
  $region27: #{tpu_custom_call.1} parent=0 // pred_check_branch
    %31 = sbr.rel (0) target = $region29
  $region28: #{tpu_custom_call.1} parent=0 // pred_region
    _
  $region29: #{tpu_custom_call.1} parent=0 // pred_fallthru
    _
  // Predicated region
  $region30: #{tpu_custom_call.1} parent=0 // pred_check
    _
  $region31: #{tpu_custom_call.1} parent=0 // pred_check_branch
    %33 = sbr.rel (0) target = $region33
  $region32: #{tpu_custom_call.1} parent=0 // pred_region
    _
  $region33: #{tpu_custom_call.1} parent=0 // pred_fallthru
    _
  // Predicated region
  $region34: #{tpu_custom_call.1} parent=0 // pred_check
    _
  $region35: #{tpu_custom_call.1} parent=0 // pred_check_branch
    %35 = sbr.rel (0) target = $region37
  $region36: #{tpu_custom_call.1} parent=0 // pred_region
    _
  $region37: #{tpu_custom_call.1} parent=0 // pred_fallthru
    _
  // Predicated region
  $region38: #{tpu_custom_call.1} parent=0 // pred_check
    _
  $region39: #{tpu_custom_call.1} parent=0 // pred_check_branch
    %37 = sbr.rel (0) target = $region41
  $region40: #{tpu_custom_call.1} parent=0 // pred_region
    _
  $region41: #{tpu_custom_call.1} parent=0 // pred_fallthru
    _
  // Predicated region
  $region42: #{tpu_custom_call.1} parent=0 // pred_check
    _
  $region43: #{tpu_custom_call.1} parent=0 // pred_check_branch
    %39 = sbr.rel (0) target = $region45
  $region44: #{tpu_custom_call.1} parent=0 // pred_region
    _
  $region45: #{tpu_custom_call.1} parent=0 // pred_fallthru
    _
  // Predicated region
  $region46: #{tpu_custom_call.1} parent=0 // pred_check
    _
  $region47: #{tpu_custom_call.1} parent=0 // pred_check_branch
    %41 = sbr.rel (0) target = $region49
  $region48: #{tpu_custom_call.1} parent=0 // pred_region
    _
  $region49: #{tpu_custom_call.1} parent=0 // pred_fallthru
    _
  %s42 = sld [smem:[#allocation2]]
  %v43 = vld [vmem:[%s1] sm:$0xff]
  %v44 = vld [vmem:[%s1 + $0x8] sm:$0xff]
  %v45 = vld [vmem:[%s1 + $0x10] sm:$0xff]
  %v46 = vld [vmem:[%s1 + $0x18] sm:$0xff]
  %v47 = vld [vmem:[%s1 + $0x20] sm:$0xff]
  %v48 = vld [vmem:[%s1 + $0x28] sm:$0xff]
  %v49 = vld [vmem:[%s1 + $0x30] sm:$0xff]
  %v50 = vld [vmem:[%s1 + $0x38] sm:$0xff]
  %v51 = vld [vmem:[%s2] sm:$0xff]
  %v52 = vld [vmem:[%s2 + $0x8] sm:$0xff]
  %v53 = vld [vmem:[%s2 + $0x10] sm:$0xff]
  %v54 = vld [vmem:[%s2 + $0x18] sm:$0xff]
  %v55 = vld [vmem:[%s3] sm:$0xff]
  %v56 = vld [vmem:[%s3 + $0x8] sm:$0xff]
  %v57 = vld [vmem:[%s3 + $0x10] sm:$0xff]
  %v58 = vld [vmem:[%s3 + $0x18] sm:$0xff]
  %v59 = vld [vmem:[%s4] sm:$0x1]
  %v61 = vlaneseq
  %v62 = vshrl.u32 %v61, 7
  %v63 = vsub.s32 0, %v62
  %v64 = vrot.slane %v59, %v63
  %vm66 = vcmask 261120
  %v68 = vsel %vm66, %v43, 0
  %v71 = vsel %vm66, %v44, 0
  %v74 = vsel %vm66, %v45, 0
  %v77 = vsel %vm66, %v46, 0
  %v80 = vsel %vm66, %v47, 0
  %v83 = vsel %vm66, %v48, 0
  %v86 = vsel %vm66, %v49, 0
  %v89 = vsel %vm66, %v50, 0
  %91 = vmatprep.subr.mxu0 0.0
  %92 = vmatpush1.msra.mxu0 0.0
  %93 = vmatprep.subr.mxu0 0.0
  %94 = vmatpush1.msra.mxu0 0.0
  %95 = vmatprep.subr.mxu0 0.0
  %96 = vmatpush1.msra.mxu0 0.0
  %97 = vmatprep.subr.mxu0 0.0
  %98 = vmatpush1.msra.mxu0 0.0
  %99 = vmatprep.subr.mxu0 0.0
  %100 = vmatpush1.msra.mxu0 0.0
  %101 = vmatprep.subr.mxu0 0.0
  %102 = vmatpush1.msra.mxu0 0.0
  %103 = vmatprep.subr.mxu0 0.0
  %104 = vmatpush1.msra.mxu0 0.0
  %105 = vmatprep.subr.mxu0 0.0
  %106 = vmatpush1.msra.mxu0 0.0
  %107 = vmatprep.subr.mxu0 0.0
  %108 = vmatpush1.msra.mxu0 0.0
  %109 = vmatprep.subr.mxu0 0.0
  %110 = vmatpush1.msra.mxu0 0.0
  %111 = vmatprep.subr.mxu0 0.0
  %112 = vmatpush1.msra.mxu0 0.0
  %113 = vmatprep.subr.mxu0 0.0
  %114 = vmatpush1.msra.mxu0 0.0
  %115 = vmatprep.subr.mxu0 0.0
  %116 = vmatpush1.msra.mxu0 %v54
  %117 = vmatprep.subr.mxu0 0.0
  %118 = vmatpush1.msra.mxu0 %v53
  %119 = vmatprep.subr.mxu0 0.0
  %120 = vmatpush1.msra.mxu0 %v52
  %121 = vmatprep.subr.mxu0 0.0
  %122 = vmatpush1.msra.mxu0 %v51
  %123 = vmatprep.subr.mxu0 0.0
  %124 = vmatpush2.msra.mxu0 0.0
  %125 = vmatprep.subr.mxu0 0.0
  %126 = vmatpush2.msra.mxu0 0.0
  %127 = vmatprep.subr.mxu0 0.0
  %128 = vmatpush2.msra.mxu0 0.0
  %129 = vmatprep.subr.mxu0 0.0
  %130 = vmatpush2.msra.mxu0 0.0
  %131 = vmatprep.subr.mxu0 0.0
  %132 = vmatpush2.msra.mxu0 0.0
  %133 = vmatprep.subr.mxu0 0.0
  %134 = vmatpush2.msra.mxu0 0.0
  %135 = vmatprep.subr.mxu0 0.0
  %136 = vmatpush2.msra.mxu0 0.0
  %137 = vmatprep.subr.mxu0 0.0
  %138 = vmatpush2.msra.mxu0 0.0
  %139 = vmatprep.subr.mxu0 0.0
  %140 = vmatpush2.msra.mxu0 0.0
  %141 = vmatprep.subr.mxu0 0.0
  %142 = vmatpush2.msra.mxu0 0.0
  %143 = vmatprep.subr.mxu0 0.0
  %144 = vmatpush2.msra.mxu0 0.0
  %145 = vmatprep.subr.mxu0 0.0
  %146 = vmatpush2.msra.mxu0 0.0
  %147 = vmatprep.subr.mxu0 0.0
  %148 = vmatpush2.msra.mxu0 0.0
  %149 = vmatprep.subr.mxu0 0.0
  %150 = vmatpush2.msra.mxu0 0.0
  %151 = vmatprep.subr.mxu0 0.0
  %152 = vmatpush2.msra.mxu0 0.0
  %153 = vmatprep.subr.mxu0 0.0
  %154 = vmatpush2.msra.mxu0 0.0
  %155 = vmatprep.mubr.f32.mxu0 0.0
  %156 = vmatmul.mubr.f32.gmra.mxu0 %v68
  %v157 = vpop.f32.mrf.mxu0
  %v158 = vadd.f32 %v64, %v157
  %v159 = vpop.f32.mrf.mxu0
  %160 = vmatprep.mubr.f32.mxu0 0.0
  %161 = vmatmul.mubr.f32.gmra.mxu0 %v71
  %v162 = vpop.f32.mrf.mxu0
  %v163 = vadd.f32 %v64, %v162
  %v164 = vpop.f32.mrf.mxu0
  %165 = vmatprep.mubr.f32.mxu0 0.0
  %166 = vmatmul.mubr.f32.gmra.mxu0 %v74
  %v167 = vpop.f32.mrf.mxu0
  %v168 = vadd.f32 %v64, %v167
  %v169 = vpop.f32.mrf.mxu0
  %170 = vmatprep.mubr.f32.mxu0 0.0
  %171 = vmatmul.mubr.f32.gmra.mxu0 %v77
  %v172 = vpop.f32.mrf.mxu0
  %v173 = vadd.f32 %v64, %v172
  %v174 = vpop.f32.mrf.mxu0
  %175 = vmatprep.mubr.f32.mxu0 0.0
  %176 = vmatmul.mubr.f32.gmra.mxu0 %v80
  %v177 = vpop.f32.mrf.mxu0
  %v178 = vadd.f32 %v64, %v177
  %v179 = vpop.f32.mrf.mxu0
  %180 = vmatprep.mubr.f32.mxu0 0.0
  %181 = vmatmul.mubr.f32.gmra.mxu0 %v83
  %v182 = vpop.f32.mrf.mxu0
  %v183 = vadd.f32 %v64, %v182
  %v184 = vpop.f32.mrf.mxu0
  %185 = vmatprep.mubr.f32.mxu0 0.0
  %186 = vmatmul.mubr.f32.gmra.mxu0 %v86
  %v187 = vpop.f32.mrf.mxu0
  %v188 = vadd.f32 %v64, %v187
  %v189 = vpop.f32.mrf.mxu0
  %190 = vmatprep.mubr.f32.mxu0 0.0
  %191 = vmatmul.mubr.f32.gmra.mxu0 %v89
  %v192 = vpop.f32.mrf.mxu0
  %v193 = vadd.f32 %v64, %v192
  %v194 = vpop.f32.mrf.mxu0
  %195 = vdwg.mxu0
  %v197 = vsel %vm66, 0.0, 0
  %199 = vmatprep.subr.mxu0 0.0
  %200 = vmatpush1.msra.mxu0 0.0
  %201 = vmatprep.subr.mxu0 0.0
  %202 = vmatpush1.msra.mxu0 0.0
  %203 = vmatprep.subr.mxu0 0.0
  %204 = vmatpush1.msra.mxu0 0.0
  %205 = vmatprep.subr.mxu0 0.0
  %206 = vmatpush1.msra.mxu0 0.0
  %207 = vmatprep.subr.mxu0 0.0
  %208 = vmatpush1.msra.mxu0 0.0
  %209 = vmatprep.subr.mxu0 0.0
  %210 = vmatpush1.msra.mxu0 0.0
  %211 = vmatprep.subr.mxu0 0.0
  %212 = vmatpush1.msra.mxu0 0.0
  %213 = vmatprep.subr.mxu0 0.0
  %214 = vmatpush1.msra.mxu0 0.0
  %215 = vmatprep.subr.mxu0 0.0
  %216 = vmatpush1.msra.mxu0 0.0
  %217 = vmatprep.subr.mxu0 0.0
  %218 = vmatpush1.msra.mxu0 0.0
  %219 = vmatprep.subr.mxu0 0.0
  %220 = vmatpush1.msra.mxu0 0.0
  %221 = vmatprep.subr.mxu0 0.0
  %222 = vmatpush1.msra.mxu0 0.0
  %223 = vmatprep.subr.mxu0 0.0
  %224 = vmatpush1.msra.mxu0 %v58
  %225 = vmatprep.subr.mxu0 0.0
  %226 = vmatpush1.msra.mxu0 %v57
  %227 = vmatprep.subr.mxu0 0.0
  %228 = vmatpush1.msra.mxu0 %v56
  %229 = vmatprep.subr.mxu0 0.0
  %230 = vmatpush1.msra.mxu0 %v55
  %231 = vmatprep.subr.mxu0 0.0
  %232 = vmatpush2.msra.mxu0 0.0
  %233 = vmatprep.subr.mxu0 0.0
  %234 = vmatpush2.msra.mxu0 0.0
  %235 = vmatprep.subr.mxu0 0.0
  %236 = vmatpush2.msra.mxu0 0.0
  %237 = vmatprep.subr.mxu0 0.0
  %238 = vmatpush2.msra.mxu0 0.0
  %239 = vmatprep.subr.mxu0 0.0
  %240 = vmatpush2.msra.mxu0 0.0
  %241 = vmatprep.subr.mxu0 0.0
  %242 = vmatpush2.msra.mxu0 0.0
  %243 = vmatprep.subr.mxu0 0.0
  %244 = vmatpush2.msra.mxu0 0.0
  %245 = vmatprep.subr.mxu0 0.0
  %246 = vmatpush2.msra.mxu0 0.0
  %247 = vmatprep.subr.mxu0 0.0
  %248 = vmatpush2.msra.mxu0 0.0
  %249 = vmatprep.subr.mxu0 0.0
  %250 = vmatpush2.msra.mxu0 0.0
  %251 = vmatprep.subr.mxu0 0.0
  %252 = vmatpush2.msra.mxu0 0.0
  %253 = vmatprep.subr.mxu0 0.0
  %254 = vmatpush2.msra.mxu0 0.0
  %255 = vmatprep.subr.mxu0 0.0
  %256 = vmatpush2.msra.mxu0 0.0
  %257 = vmatprep.subr.mxu0 0.0
  %258 = vmatpush2.msra.mxu0 0.0
  %259 = vmatprep.subr.mxu0 0.0
  %260 = vmatpush2.msra.mxu0 0.0
  %261 = vmatprep.subr.mxu0 0.0
  %262 = vmatpush2.msra.mxu0 0.0
  %263 = vmatprep.mubr.f32.mxu0 0.0
  %264 = vmatmul.mubr.f32.gmra.mxu0 %v197
  %v265 = vpop.f32.mrf.mxu0
  %v266 = vadd.f32 0.0, %v265
  %v267 = vpop.f32.mrf.mxu0
  %268 = vdwg.mxu0
  %v269 = vadd.f32 %v158, %v266
  %v270 = vxor.u32 %v269, 2147483648
  %v271 = vmul.f32 %v270, 1.442695
  %v272 = vpow.pop %v271
  %v273 = vadd.f32 %v272, 1.0
  %v274 = vrcp.pop %v273
  %v275 = vmul.f32 1.0, %v274
  %v276 = vtanh.pop %v269
  %v277 = vmul.f32 %v275, 0.0
  %279 = vrot.lane.b32.xlu0 %v276, 64
  %v280 = vpop.permute.xlu0 %279
  %v282 = vmul.f32 %v275, %v280
  %284 = vrot.lane.b32.xlu0 %v282, 32
  %v285 = vpop.permute.xlu0 %284
  %v287 = vadd.f32 %v277, %v285
  %v288 = vtanh.pop %v287
  %290 = vrot.lane.b32.xlu0 %v288, 64
  %v291 = vpop.permute.xlu0 %290
  %v293 = vmul.f32 %v275, %v291
  %295 = vrot.lane.b32.xlu0 %v293, 32
  %v296 = vpop.permute.xlu0 %295
  %v297 = vsel %vm66, %v296, 0
  %299 = vmatprep.subr.mxu0 0.0
  %300 = vmatpush1.msra.mxu0 0.0
  %301 = vmatprep.subr.mxu0 0.0
  %302 = vmatpush1.msra.mxu0 0.0
  %303 = vmatprep.subr.mxu0 0.0
  %304 = vmatpush1.msra.mxu0 0.0
  %305 = vmatprep.subr.mxu0 0.0
  %306 = vmatpush1.msra.mxu0 0.0
  %307 = vmatprep.subr.mxu0 0.0
  %308 = vmatpush1.msra.mxu0 0.0
  %309 = vmatprep.subr.mxu0 0.0
  %310 = vmatpush1.msra.mxu0 0.0
  %311 = vmatprep.subr.mxu0 0.0
  %312 = vmatpush1.msra.mxu0 0.0
  %313 = vmatprep.subr.mxu0 0.0
  %314 = vmatpush1.msra.mxu0 0.0
  %315 = vmatprep.subr.mxu0 0.0
  %316 = vmatpush1.msra.mxu0 0.0
  %317 = vmatprep.subr.mxu0 0.0
  %318 = vmatpush1.msra.mxu0 0.0
  %319 = vmatprep.subr.mxu0 0.0
  %320 = vmatpush1.msra.mxu0 0.0
  %321 = vmatprep.subr.mxu0 0.0
  %322 = vmatpush1.msra.mxu0 0.0
  %323 = vmatprep.subr.mxu0 0.0
  %324 = vmatpush1.msra.mxu0 %v58
  %325 = vmatprep.subr.mxu0 0.0
  %326 = vmatpush1.msra.mxu0 %v57
  %327 = vmatprep.subr.mxu0 0.0
  %328 = vmatpush1.msra.mxu0 %v56
  %329 = vmatprep.subr.mxu0 0.0
  %330 = vmatpush1.msra.mxu0 %v55
  %331 = vmatprep.subr.mxu0 0.0
  %332 = vmatpush2.msra.mxu0 0.0
  %333 = vmatprep.subr.mxu0 0.0
  %334 = vmatpush2.msra.mxu0 0.0
  %335 = vmatprep.subr.mxu0 0.0
  %336 = vmatpush2.msra.mxu0 0.0
  %337 = vmatprep.subr.mxu0 0.0
  %338 = vmatpush2.msra.mxu0 0.0
  %339 = vmatprep.subr.mxu0 0.0
  %340 = vmatpush2.msra.mxu0 0.0
  %341 = vmatprep.subr.mxu0 0.0
  %342 = vmatpush2.msra.mxu0 0.0
  %343 = vmatprep.subr.mxu0 0.0
  %344 = vmatpush2.msra.mxu0 0.0
  %345 = vmatprep.subr.mxu0 0.0
  %346 = vmatpush2.msra.mxu0 0.0
  %347 = vmatprep.subr.mxu0 0.0
  %348 = vmatpush2.msra.mxu0 0.0
  %349 = vmatprep.subr.mxu0 0.0
  %350 = vmatpush2.msra.mxu0 0.0
  %351 = vmatprep.subr.mxu0 0.0
  %352 = vmatpush2.msra.mxu0 0.0
  %353 = vmatprep.subr.mxu0 0.0
  %354 = vmatpush2.msra.mxu0 0.0
  %355 = vmatprep.subr.mxu0 0.0
  %356 = vmatpush2.msra.mxu0 0.0
  %357 = vmatprep.subr.mxu0 0.0
  %358 = vmatpush2.msra.mxu0 0.0
  %359 = vmatprep.subr.mxu0 0.0
  %360 = vmatpush2.msra.mxu0 0.0
  %361 = vmatprep.subr.mxu0 0.0
  %362 = vmatpush2.msra.mxu0 0.0
  %363 = vmatprep.mubr.f32.mxu0 0.0
  %364 = vmatmul.mubr.f32.gmra.mxu0 %v297
  %v365 = vpop.f32.mrf.mxu0
  %v366 = vadd.f32 0.0, %v365
  %v367 = vpop.f32.mrf.mxu0
  %368 = vdwg.mxu0
  %v369 = vadd.f32 %v163, %v366
  %v370 = vxor.u32 %v369, 2147483648
  %v371 = vmul.f32 %v370, 1.442695
  %v372 = vpow.pop %v371
  %v373 = vadd.f32 %v372, 1.0
  %v374 = vrcp.pop %v373
  %v375 = vmul.f32 1.0, %v374
  %v376 = vtanh.pop %v369
  %v377 = vmul.f32 %v375, %v287
  %379 = vrot.lane.b32.xlu0 %v376, 64
  %v380 = vpop.permute.xlu0 %379
  %v382 = vmul.f32 %v375, %v380
  %384 = vrot.lane.b32.xlu0 %v382, 32
  %v385 = vpop.permute.xlu0 %384
  %v387 = vadd.f32 %v377, %v385
  %v388 = vtanh.pop %v387
  %390 = vrot.lane.b32.xlu0 %v388, 64
  %v391 = vpop.permute.xlu0 %390
  %v393 = vmul.f32 %v375, %v391
  %395 = vrot.lane.b32.xlu0 %v393, 32
  %v396 = vpop.permute.xlu0 %395
  %v397 = vsel %vm66, %v396, 0
  %399 = vmatprep.subr.mxu0 0.0
  %400 = vmatpush1.msra.mxu0 0.0
  %401 = vmatprep.subr.mxu0 0.0
  %402 = vmatpush1.msra.mxu0 0.0
  %403 = vmatprep.subr.mxu0 0.0
  %404 = vmatpush1.msra.mxu0 0.0
  %405 = vmatprep.subr.mxu0 0.0
  %406 = vmatpush1.msra.mxu0 0.0
  %407 = vmatprep.subr.mxu0 0.0
  %408 = vmatpush1.msra.mxu0 0.0
  %409 = vmatprep.subr.mxu0 0.0
  %410 = vmatpush1.msra.mxu0 0.0
  %411 = vmatprep.subr.mxu0 0.0
  %412 = vmatpush1.msra.mxu0 0.0
  %413 = vmatprep.subr.mxu0 0.0
  %414 = vmatpush1.msra.mxu0 0.0
  %415 = vmatprep.subr.mxu0 0.0
  %416 = vmatpush1.msra.mxu0 0.0
  %417 = vmatprep.subr.mxu0 0.0
  %418 = vmatpush1.msra.mxu0 0.0
  %419 = vmatprep.subr.mxu0 0.0
  %420 = vmatpush1.msra.mxu0 0.0
  %421 = vmatprep.subr.mxu0 0.0
  %422 = vmatpush1.msra.mxu0 0.0
  %423 = vmatprep.subr.mxu0 0.0
  %424 = vmatpush1.msra.mxu0 %v58
  %425 = vmatprep.subr.mxu0 0.0
  %426 = vmatpush1.msra.mxu0 %v57
  %427 = vmatprep.subr.mxu0 0.0
  %428 = vmatpush1.msra.mxu0 %v56
  %429 = vmatprep.subr.mxu0 0.0
  %430 = vmatpush1.msra.mxu0 %v55
  %431 = vmatprep.subr.mxu0 0.0
  %432 = vmatpush2.msra.mxu0 0.0
  %433 = vmatprep.subr.mxu0 0.0
  %434 = vmatpush2.msra.mxu0 0.0
  %435 = vmatprep.subr.mxu0 0.0
  %436 = vmatpush2.msra.mxu0 0.0
  %437 = vmatprep.subr.mxu0 0.0
  %438 = vmatpush2.msra.mxu0 0.0
  %439 = vmatprep.subr.mxu0 0.0
  %440 = vmatpush2.msra.mxu0 0.0
  %441 = vmatprep.subr.mxu0 0.0
  %442 = vmatpush2.msra.mxu0 0.0
  %443 = vmatprep.subr.mxu0 0.0
  %444 = vmatpush2.msra.mxu0 0.0
  %445 = vmatprep.subr.mxu0 0.0
  %446 = vmatpush2.msra.mxu0 0.0
  %447 = vmatprep.subr.mxu0 0.0
  %448 = vmatpush2.msra.mxu0 0.0
  %449 = vmatprep.subr.mxu0 0.0
  %450 = vmatpush2.msra.mxu0 0.0
  %451 = vmatprep.subr.mxu0 0.0
  %452 = vmatpush2.msra.mxu0 0.0
  %453 = vmatprep.subr.mxu0 0.0
  %454 = vmatpush2.msra.mxu0 0.0
  %455 = vmatprep.subr.mxu0 0.0
  %456 = vmatpush2.msra.mxu0 0.0
  %457 = vmatprep.subr.mxu0 0.0
  %458 = vmatpush2.msra.mxu0 0.0
  %459 = vmatprep.subr.mxu0 0.0
  %460 = vmatpush2.msra.mxu0 0.0
  %461 = vmatprep.subr.mxu0 0.0
  %462 = vmatpush2.msra.mxu0 0.0
  %463 = vmatprep.mubr.f32.mxu0 0.0
  %464 = vmatmul.mubr.f32.gmra.mxu0 %v397
  %v465 = vpop.f32.mrf.mxu0
  %v466 = vadd.f32 0.0, %v465
  %v467 = vpop.f32.mrf.mxu0
  %468 = vdwg.mxu0
  %v469 = vadd.f32 %v168, %v466
  %v470 = vxor.u32 %v469, 2147483648
  %v471 = vmul.f32 %v470, 1.442695
  %v472 = vpow.pop %v471
  %v473 = vadd.f32 %v472, 1.0
  %v474 = vrcp.pop %v473
  %v475 = vmul.f32 1.0, %v474
  %v476 = vtanh.pop %v469
  %v477 = vmul.f32 %v475, %v387
  %479 = vrot.lane.b32.xlu0 %v476, 64
  %v480 = vpop.permute.xlu0 %479
  %v482 = vmul.f32 %v475, %v480
  %484 = vrot.lane.b32.xlu0 %v482, 32
  %v485 = vpop.permute.xlu0 %484
  %v487 = vadd.f32 %v477, %v485
  %v488 = vtanh.pop %v487
  %490 = vrot.lane.b32.xlu0 %v488, 64
  %v491 = vpop.permute.xlu0 %490
  %v493 = vmul.f32 %v475, %v491
  %495 = vrot.lane.b32.xlu0 %v493, 32
  %v496 = vpop.permute.xlu0 %495
  %v497 = vsel %vm66, %v496, 0
  %499 = vmatprep.subr.mxu0 0.0
  %500 = vmatpush1.msra.mxu0 0.0
  %501 = vmatprep.subr.mxu0 0.0
  %502 = vmatpush1.msra.mxu0 0.0
  %503 = vmatprep.subr.mxu0 0.0
  %504 = vmatpush1.msra.mxu0 0.0
  %505 = vmatprep.subr.mxu0 0.0
  %506 = vmatpush1.msra.mxu0 0.0
  %507 = vmatprep.subr.mxu0 0.0
  %508 = vmatpush1.msra.mxu0 0.0
  %509 = vmatprep.subr.mxu0 0.0
  %510 = vmatpush1.msra.mxu0 0.0
  %511 = vmatprep.subr.mxu0 0.0
  %512 = vmatpush1.msra.mxu0 0.0
  %513 = vmatprep.subr.mxu0 0.0
  %514 = vmatpush1.msra.mxu0 0.0
  %515 = vmatprep.subr.mxu0 0.0
  %516 = vmatpush1.msra.mxu0 0.0
  %517 = vmatprep.subr.mxu0 0.0
  %518 = vmatpush1.msra.mxu0 0.0
  %519 = vmatprep.subr.mxu0 0.0
  %520 = vmatpush1.msra.mxu0 0.0
  %521 = vmatprep.subr.mxu0 0.0
  %522 = vmatpush1.msra.mxu0 0.0
  %523 = vmatprep.subr.mxu0 0.0
  %524 = vmatpush1.msra.mxu0 %v58
  %525 = vmatprep.subr.mxu0 0.0
  %526 = vmatpush1.msra.mxu0 %v57
  %527 = vmatprep.subr.mxu0 0.0
  %528 = vmatpush1.msra.mxu0 %v56
  %529 = vmatprep.subr.mxu0 0.0
  %530 = vmatpush1.msra.mxu0 %v55
  %531 = vmatprep.subr.mxu0 0.0
  %532 = vmatpush2.msra.mxu0 0.0
  %533 = vmatprep.subr.mxu0 0.0
  %534 = vmatpush2.msra.mxu0 0.0
  %535 = vmatprep.subr.mxu0 0.0
  %536 = vmatpush2.msra.mxu0 0.0
  %537 = vmatprep.subr.mxu0 0.0
  %538 = vmatpush2.msra.mxu0 0.0
  %539 = vmatprep.subr.mxu0 0.0
  %540 = vmatpush2.msra.mxu0 0.0
  %541 = vmatprep.subr.mxu0 0.0
  %542 = vmatpush2.msra.mxu0 0.0
  %543 = vmatprep.subr.mxu0 0.0
  %544 = vmatpush2.msra.mxu0 0.0
  %545 = vmatprep.subr.mxu0 0.0
  %546 = vmatpush2.msra.mxu0 0.0
  %547 = vmatprep.subr.mxu0 0.0
  %548 = vmatpush2.msra.mxu0 0.0
  %549 = vmatprep.subr.mxu0 0.0
  %550 = vmatpush2.msra.mxu0 0.0
  %551 = vmatprep.subr.mxu0 0.0
  %552 = vmatpush2.msra.mxu0 0.0
  %553 = vmatprep.subr.mxu0 0.0
  %554 = vmatpush2.msra.mxu0 0.0
  %555 = vmatprep.subr.mxu0 0.0
  %556 = vmatpush2.msra.mxu0 0.0
  %557 = vmatprep.subr.mxu0 0.0
  %558 = vmatpush2.msra.mxu0 0.0
  %559 = vmatprep.subr.mxu0 0.0
  %560 = vmatpush2.msra.mxu0 0.0
  %561 = vmatprep.subr.mxu0 0.0
  %562 = vmatpush2.msra.mxu0 0.0
  %563 = vmatprep.mubr.f32.mxu0 0.0
  %564 = vmatmul.mubr.f32.gmra.mxu0 %v497
  %v565 = vpop.f32.mrf.mxu0
  %v566 = vadd.f32 0.0, %v565
  %v567 = vpop.f32.mrf.mxu0
  %568 = vdwg.mxu0
  %v569 = vadd.f32 %v173, %v566
  %v570 = vxor.u32 %v569, 2147483648
  %v571 = vmul.f32 %v570, 1.442695
  %v572 = vpow.pop %v571
  %v573 = vadd.f32 %v572, 1.0
  %v574 = vrcp.pop %v573
  %v575 = vmul.f32 1.0, %v574
  %v576 = vtanh.pop %v569
  %v577 = vmul.f32 %v575, %v487
  %579 = vrot.lane.b32.xlu0 %v576, 64
  %v580 = vpop.permute.xlu0 %579
  %v582 = vmul.f32 %v575, %v580
  %584 = vrot.lane.b32.xlu0 %v582, 32
  %v585 = vpop.permute.xlu0 %584
  %v587 = vadd.f32 %v577, %v585
  %v588 = vtanh.pop %v587
  %590 = vrot.lane.b32.xlu0 %v588, 64
  %v591 = vpop.permute.xlu0 %590
  %v593 = vmul.f32 %v575, %v591
  %595 = vrot.lane.b32.xlu0 %v593, 32
  %v596 = vpop.permute.xlu0 %595
  %v597 = vsel %vm66, %v596, 0
  %599 = vmatprep.subr.mxu0 0.0
  %600 = vmatpush1.msra.mxu0 0.0
  %601 = vmatprep.subr.mxu0 0.0
  %602 = vmatpush1.msra.mxu0 0.0
  %603 = vmatprep.subr.mxu0 0.0
  %604 = vmatpush1.msra.mxu0 0.0
  %605 = vmatprep.subr.mxu0 0.0
  %606 = vmatpush1.msra.mxu0 0.0
  %607 = vmatprep.subr.mxu0 0.0
  %608 = vmatpush1.msra.mxu0 0.0
  %609 = vmatprep.subr.mxu0 0.0
  %610 = vmatpush1.msra.mxu0 0.0
  %611 = vmatprep.subr.mxu0 0.0
  %612 = vmatpush1.msra.mxu0 0.0
  %613 = vmatprep.subr.mxu0 0.0
  %614 = vmatpush1.msra.mxu0 0.0
  %615 = vmatprep.subr.mxu0 0.0
  %616 = vmatpush1.msra.mxu0 0.0
  %617 = vmatprep.subr.mxu0 0.0
  %618 = vmatpush1.msra.mxu0 0.0
  %619 = vmatprep.subr.mxu0 0.0
  %620 = vmatpush1.msra.mxu0 0.0
  %621 = vmatprep.subr.mxu0 0.0
  %622 = vmatpush1.msra.mxu0 0.0
  %623 = vmatprep.subr.mxu0 0.0
  %624 = vmatpush1.msra.mxu0 %v58
  %625 = vmatprep.subr.mxu0 0.0
  %626 = vmatpush1.msra.mxu0 %v57
  %627 = vmatprep.subr.mxu0 0.0
  %628 = vmatpush1.msra.mxu0 %v56
  %629 = vmatprep.subr.mxu0 0.0
  %630 = vmatpush1.msra.mxu0 %v55
  %631 = vmatprep.subr.mxu0 0.0
  %632 = vmatpush2.msra.mxu0 0.0
  %633 = vmatprep.subr.mxu0 0.0
  %634 = vmatpush2.msra.mxu0 0.0
  %635 = vmatprep.subr.mxu0 0.0
  %636 = vmatpush2.msra.mxu0 0.0
  %637 = vmatprep.subr.mxu0 0.0
  %638 = vmatpush2.msra.mxu0 0.0
  %639 = vmatprep.subr.mxu0 0.0
  %640 = vmatpush2.msra.mxu0 0.0
  %641 = vmatprep.subr.mxu0 0.0
  %642 = vmatpush2.msra.mxu0 0.0
  %643 = vmatprep.subr.mxu0 0.0
  %644 = vmatpush2.msra.mxu0 0.0
  %645 = vmatprep.subr.mxu0 0.0
  %646 = vmatpush2.msra.mxu0 0.0
  %647 = vmatprep.subr.mxu0 0.0
  %648 = vmatpush2.msra.mxu0 0.0
  %649 = vmatprep.subr.mxu0 0.0
  %650 = vmatpush2.msra.mxu0 0.0
  %651 = vmatprep.subr.mxu0 0.0
  %652 = vmatpush2.msra.mxu0 0.0
  %653 = vmatprep.subr.mxu0 0.0
  %654 = vmatpush2.msra.mxu0 0.0
  %655 = vmatprep.subr.mxu0 0.0
  %656 = vmatpush2.msra.mxu0 0.0
  %657 = vmatprep.subr.mxu0 0.0
  %658 = vmatpush2.msra.mxu0 0.0
  %659 = vmatprep.subr.mxu0 0.0
  %660 = vmatpush2.msra.mxu0 0.0
  %661 = vmatprep.subr.mxu0 0.0
  %662 = vmatpush2.msra.mxu0 0.0
  %663 = vmatprep.mubr.f32.mxu0 0.0
  %664 = vmatmul.mubr.f32.gmra.mxu0 %v597
  %v665 = vpop.f32.mrf.mxu0
  %v666 = vadd.f32 0.0, %v665
  %v667 = vpop.f32.mrf.mxu0
  %668 = vdwg.mxu0
  %v669 = vadd.f32 %v178, %v666
  %v670 = vxor.u32 %v669, 2147483648
  %v671 = vmul.f32 %v670, 1.442695
  %v672 = vpow.pop %v671
  %v673 = vadd.f32 %v672, 1.0
  %v674 = vrcp.pop %v673
  %v675 = vmul.f32 1.0, %v674
  %v676 = vtanh.pop %v669
  %v677 = vmul.f32 %v675, %v587
  %679 = vrot.lane.b32.xlu0 %v676, 64
  %v680 = vpop.permute.xlu0 %679
  %v682 = vmul.f32 %v675, %v680
  %684 = vrot.lane.b32.xlu0 %v682, 32
  %v685 = vpop.permute.xlu0 %684
  %v687 = vadd.f32 %v677, %v685
  %v688 = vtanh.pop %v687
  %690 = vrot.lane.b32.xlu0 %v688, 64
  %v691 = vpop.permute.xlu0 %690
  %v693 = vmul.f32 %v675, %v691
  %695 = vrot.lane.b32.xlu0 %v693, 32
  %v696 = vpop.permute.xlu0 %695
  %v697 = vsel %vm66, %v696, 0
  %699 = vmatprep.subr.mxu0 0.0
  %700 = vmatpush1.msra.mxu0 0.0
  %701 = vmatprep.subr.mxu0 0.0
  %702 = vmatpush1.msra.mxu0 0.0
  %703 = vmatprep.subr.mxu0 0.0
  %704 = vmatpush1.msra.mxu0 0.0
  %705 = vmatprep.subr.mxu0 0.0
  %706 = vmatpush1.msra.mxu0 0.0
  %707 = vmatprep.subr.mxu0 0.0
  %708 = vmatpush1.msra.mxu0 0.0
  %709 = vmatprep.subr.mxu0 0.0
  %710 = vmatpush1.msra.mxu0 0.0
  %711 = vmatprep.subr.mxu0 0.0
  %712 = vmatpush1.msra.mxu0 0.0
  %713 = vmatprep.subr.mxu0 0.0
  %714 = vmatpush1.msra.mxu0 0.0
  %715 = vmatprep.subr.mxu0 0.0
  %716 = vmatpush1.msra.mxu0 0.0
  %717 = vmatprep.subr.mxu0 0.0
  %718 = vmatpush1.msra.mxu0 0.0
  %719 = vmatprep.subr.mxu0 0.0
  %720 = vmatpush1.msra.mxu0 0.0
  %721 = vmatprep.subr.mxu0 0.0
  %722 = vmatpush1.msra.mxu0 0.0
  %723 = vmatprep.subr.mxu0 0.0
  %724 = vmatpush1.msra.mxu0 %v58
  %725 = vmatprep.subr.mxu0 0.0
  %726 = vmatpush1.msra.mxu0 %v57
  %727 = vmatprep.subr.mxu0 0.0
  %728 = vmatpush1.msra.mxu0 %v56
  %729 = vmatprep.subr.mxu0 0.0
  %730 = vmatpush1.msra.mxu0 %v55
  %731 = vmatprep.subr.mxu0 0.0
  %732 = vmatpush2.msra.mxu0 0.0
  %733 = vmatprep.subr.mxu0 0.0
  %734 = vmatpush2.msra.mxu0 0.0
  %735 = vmatprep.subr.mxu0 0.0
  %736 = vmatpush2.msra.mxu0 0.0
  %737 = vmatprep.subr.mxu0 0.0
  %738 = vmatpush2.msra.mxu0 0.0
  %739 = vmatprep.subr.mxu0 0.0
  %740 = vmatpush2.msra.mxu0 0.0
  %741 = vmatprep.subr.mxu0 0.0
  %742 = vmatpush2.msra.mxu0 0.0
  %743 = vmatprep.subr.mxu0 0.0
  %744 = vmatpush2.msra.mxu0 0.0
  %745 = vmatprep.subr.mxu0 0.0
  %746 = vmatpush2.msra.mxu0 0.0
  %747 = vmatprep.subr.mxu0 0.0
  %748 = vmatpush2.msra.mxu0 0.0
  %749 = vmatprep.subr.mxu0 0.0
  %750 = vmatpush2.msra.mxu0 0.0
  %751 = vmatprep.subr.mxu0 0.0
  %752 = vmatpush2.msra.mxu0 0.0
  %753 = vmatprep.subr.mxu0 0.0
  %754 = vmatpush2.msra.mxu0 0.0
  %755 = vmatprep.subr.mxu0 0.0
  %756 = vmatpush2.msra.mxu0 0.0
  %757 = vmatprep.subr.mxu0 0.0
  %758 = vmatpush2.msra.mxu0 0.0
  %759 = vmatprep.subr.mxu0 0.0
  %760 = vmatpush2.msra.mxu0 0.0
  %761 = vmatprep.subr.mxu0 0.0
  %762 = vmatpush2.msra.mxu0 0.0
  %763 = vmatprep.mubr.f32.mxu0 0.0
  %764 = vmatmul.mubr.f32.gmra.mxu0 %v697
  %v765 = vpop.f32.mrf.mxu0
  %v766 = vadd.f32 0.0, %v765
  %v767 = vpop.f32.mrf.mxu0
  %768 = vdwg.mxu0
  %v769 = vadd.f32 %v183, %v766
  %v770 = vxor.u32 %v769, 2147483648
  %v771 = vmul.f32 %v770, 1.442695
  %v772 = vpow.pop %v771
  %v773 = vadd.f32 %v772, 1.0
  %v774 = vrcp.pop %v773
  %v775 = vmul.f32 1.0, %v774
  %v776 = vtanh.pop %v769
  %v777 = vmul.f32 %v775, %v687
  %779 = vrot.lane.b32.xlu0 %v776, 64
  %v780 = vpop.permute.xlu0 %779
  %v782 = vmul.f32 %v775, %v780
  %784 = vrot.lane.b32.xlu0 %v782, 32
  %v785 = vpop.permute.xlu0 %784
  %v787 = vadd.f32 %v777, %v785
  %v788 = vtanh.pop %v787
  %790 = vrot.lane.b32.xlu0 %v788, 64
  %v791 = vpop.permute.xlu0 %790
  %v793 = vmul.f32 %v775, %v791
  %795 = vrot.lane.b32.xlu0 %v793, 32
  %v796 = vpop.permute.xlu0 %795
  %v797 = vsel %vm66, %v796, 0
  %799 = vmatprep.subr.mxu0 0.0
  %800 = vmatpush1.msra.mxu0 0.0
  %801 = vmatprep.subr.mxu0 0.0
  %802 = vmatpush1.msra.mxu0 0.0
  %803 = vmatprep.subr.mxu0 0.0
  %804 = vmatpush1.msra.mxu0 0.0
  %805 = vmatprep.subr.mxu0 0.0
  %806 = vmatpush1.msra.mxu0 0.0
  %807 = vmatprep.subr.mxu0 0.0
  %808 = vmatpush1.msra.mxu0 0.0
  %809 = vmatprep.subr.mxu0 0.0
  %810 = vmatpush1.msra.mxu0 0.0
  %811 = vmatprep.subr.mxu0 0.0
  %812 = vmatpush1.msra.mxu0 0.0
  %813 = vmatprep.subr.mxu0 0.0
  %814 = vmatpush1.msra.mxu0 0.0
  %815 = vmatprep.subr.mxu0 0.0
  %816 = vmatpush1.msra.mxu0 0.0
  %817 = vmatprep.subr.mxu0 0.0
  %818 = vmatpush1.msra.mxu0 0.0
  %819 = vmatprep.subr.mxu0 0.0
  %820 = vmatpush1.msra.mxu0 0.0
  %821 = vmatprep.subr.mxu0 0.0
  %822 = vmatpush1.msra.mxu0 0.0
  %823 = vmatprep.subr.mxu0 0.0
  %824 = vmatpush1.msra.mxu0 %v58
  %825 = vmatprep.subr.mxu0 0.0
  %826 = vmatpush1.msra.mxu0 %v57
  %827 = vmatprep.subr.mxu0 0.0
  %828 = vmatpush1.msra.mxu0 %v56
  %829 = vmatprep.subr.mxu0 0.0
  %830 = vmatpush1.msra.mxu0 %v55
  %831 = vmatprep.subr.mxu0 0.0
  %832 = vmatpush2.msra.mxu0 0.0
  %833 = vmatprep.subr.mxu0 0.0
  %834 = vmatpush2.msra.mxu0 0.0
  %835 = vmatprep.subr.mxu0 0.0
  %836 = vmatpush2.msra.mxu0 0.0
  %837 = vmatprep.subr.mxu0 0.0
  %838 = vmatpush2.msra.mxu0 0.0
  %839 = vmatprep.subr.mxu0 0.0
  %840 = vmatpush2.msra.mxu0 0.0
  %841 = vmatprep.subr.mxu0 0.0
  %842 = vmatpush2.msra.mxu0 0.0
  %843 = vmatprep.subr.mxu0 0.0
  %844 = vmatpush2.msra.mxu0 0.0
  %845 = vmatprep.subr.mxu0 0.0
  %846 = vmatpush2.msra.mxu0 0.0
  %847 = vmatprep.subr.mxu0 0.0
  %848 = vmatpush2.msra.mxu0 0.0
  %849 = vmatprep.subr.mxu0 0.0
  %850 = vmatpush2.msra.mxu0 0.0
  %851 = vmatprep.subr.mxu0 0.0
  %852 = vmatpush2.msra.mxu0 0.0
  %853 = vmatprep.subr.mxu0 0.0
  %854 = vmatpush2.msra.mxu0 0.0
  %855 = vmatprep.subr.mxu0 0.0
  %856 = vmatpush2.msra.mxu0 0.0
  %857 = vmatprep.subr.mxu0 0.0
  %858 = vmatpush2.msra.mxu0 0.0
  %859 = vmatprep.subr.mxu0 0.0
  %860 = vmatpush2.msra.mxu0 0.0
  %861 = vmatprep.subr.mxu0 0.0
  %862 = vmatpush2.msra.mxu0 0.0
  %863 = vmatprep.mubr.f32.mxu0 0.0
  %864 = vmatmul.mubr.f32.gmra.mxu0 %v797
  %v865 = vpop.f32.mrf.mxu0
  %v866 = vadd.f32 0.0, %v865
  %v867 = vpop.f32.mrf.mxu0
  %868 = vdwg.mxu0
  %v869 = vadd.f32 %v188, %v866
  %v870 = vxor.u32 %v869, 2147483648
  %v871 = vmul.f32 %v870, 1.442695
  %v872 = vpow.pop %v871
  %v873 = vadd.f32 %v872, 1.0
  %v874 = vrcp.pop %v873
  %v875 = vmul.f32 1.0, %v874
  %v876 = vtanh.pop %v869
  %v877 = vmul.f32 %v875, %v787
  %879 = vrot.lane.b32.xlu0 %v876, 64
  %v880 = vpop.permute.xlu0 %879
  %v882 = vmul.f32 %v875, %v880
  %884 = vrot.lane.b32.xlu0 %v882, 32
  %v885 = vpop.permute.xlu0 %884
  %v887 = vadd.f32 %v877, %v885
  %v888 = vtanh.pop %v887
  %890 = vrot.lane.b32.xlu0 %v888, 64
  %v891 = vpop.permute.xlu0 %890
  %v893 = vmul.f32 %v875, %v891
  %895 = vrot.lane.b32.xlu0 %v893, 32
  %v896 = vpop.permute.xlu0 %895
  %v897 = vsel %vm66, %v896, 0
  %899 = vmatprep.subr.mxu0 0.0
  %900 = vmatpush1.msra.mxu0 0.0
  %901 = vmatprep.subr.mxu0 0.0
  %902 = vmatpush1.msra.mxu0 0.0
  %903 = vmatprep.subr.mxu0 0.0
  %904 = vmatpush1.msra.mxu0 0.0
  %905 = vmatprep.subr.mxu0 0.0
  %906 = vmatpush1.msra.mxu0 0.0
  %907 = vmatprep.subr.mxu0 0.0
  %908 = vmatpush1.msra.mxu0 0.0
  %909 = vmatprep.subr.mxu0 0.0
  %910 = vmatpush1.msra.mxu0 0.0
  %911 = vmatprep.subr.mxu0 0.0
  %912 = vmatpush1.msra.mxu0 0.0
  %913 = vmatprep.subr.mxu0 0.0
  %914 = vmatpush1.msra.mxu0 0.0
  %915 = vmatprep.subr.mxu0 0.0
  %916 = vmatpush1.msra.mxu0 0.0
  %917 = vmatprep.subr.mxu0 0.0
  %918 = vmatpush1.msra.mxu0 0.0
  %919 = vmatprep.subr.mxu0 0.0
  %920 = vmatpush1.msra.mxu0 0.0
  %921 = vmatprep.subr.mxu0 0.0
  %922 = vmatpush1.msra.mxu0 0.0
  %923 = vmatprep.subr.mxu0 0.0
  %924 = vmatpush1.msra.mxu0 %v58
  %925 = vmatprep.subr.mxu0 0.0
  %926 = vmatpush1.msra.mxu0 %v57
  %927 = vmatprep.subr.mxu0 0.0
  %928 = vmatpush1.msra.mxu0 %v56
  %929 = vmatprep.subr.mxu0 0.0
  %930 = vmatpush1.msra.mxu0 %v55
  %931 = vmatprep.subr.mxu0 0.0
  %932 = vmatpush2.msra.mxu0 0.0
  %933 = vmatprep.subr.mxu0 0.0
  %934 = vmatpush2.msra.mxu0 0.0
  %935 = vmatprep.subr.mxu0 0.0
  %936 = vmatpush2.msra.mxu0 0.0
  %937 = vmatprep.subr.mxu0 0.0
  %938 = vmatpush2.msra.mxu0 0.0
  %939 = vmatprep.subr.mxu0 0.0
  %940 = vmatpush2.msra.mxu0 0.0
  %941 = vmatprep.subr.mxu0 0.0
  %942 = vmatpush2.msra.mxu0 0.0
  %943 = vmatprep.subr.mxu0 0.0
  %944 = vmatpush2.msra.mxu0 0.0
  %945 = vmatprep.subr.mxu0 0.0
  %946 = vmatpush2.msra.mxu0 0.0
  %947 = vmatprep.subr.mxu0 0.0
  %948 = vmatpush2.msra.mxu0 0.0
  %949 = vmatprep.subr.mxu0 0.0
  %950 = vmatpush2.msra.mxu0 0.0
  %951 = vmatprep.subr.mxu0 0.0
  %952 = vmatpush2.msra.mxu0 0.0
  %953 = vmatprep.subr.mxu0 0.0
  %954 = vmatpush2.msra.mxu0 0.0
  %955 = vmatprep.subr.mxu0 0.0
  %956 = vmatpush2.msra.mxu0 0.0
  %957 = vmatprep.subr.mxu0 0.0
  %958 = vmatpush2.msra.mxu0 0.0
  %959 = vmatprep.subr.mxu0 0.0
  %960 = vmatpush2.msra.mxu0 0.0
  %961 = vmatprep.subr.mxu0 0.0
  %962 = vmatpush2.msra.mxu0 0.0
  %963 = vmatprep.mubr.f32.mxu0 0.0
  %964 = vmatmul.mubr.f32.gmra.mxu0 %v897
  %v965 = vpop.f32.mrf.mxu0
  %v966 = vadd.f32 0.0, %v965
  %v967 = vpop.f32.mrf.mxu0
  %968 = vdwg.mxu0
  %v969 = vadd.f32 %v193, %v966
  %v970 = vxor.u32 %v969, 2147483648
  %v971 = vmul.f32 %v970, 1.442695
  %v972 = vpow.pop %v971
  %v973 = vadd.f32 %v972, 1.0
  %v974 = vrcp.pop %v973
  %v975 = vmul.f32 1.0, %v974
  %v976 = vtanh.pop %v969
  %v977 = vmul.f32 %v975, %v887
  %979 = vrot.lane.b32.xlu0 %v976, 64
  %v980 = vpop.permute.xlu0 %979
  %v982 = vmul.f32 %v975, %v980
  %984 = vrot.lane.b32.xlu0 %v982, 32
  %v985 = vpop.permute.xlu0 %984
  %v987 = vadd.f32 %v977, %v985
  %v988 = vtanh.pop %v987
  %990 = vrot.lane.b32.xlu0 %v988, 64
  %v991 = vpop.permute.xlu0 %990
  %v993 = vmul.f32 %v975, %v991
  %v994 = vld [vmem:[%s5] sm:$0xff]
  %v995 = vld [vmem:[%s5 + $0x8] sm:$0xff]
  %v996 = vld [vmem:[%s5 + $0x10] sm:$0xff]
  %v997 = vld [vmem:[%s5 + $0x18] sm:$0xff]
  %v998 = vld [vmem:[%s6] sm:$0xff]
  %v999 = vld [vmem:[%s6 + $0x8] sm:$0xff]
  %v1000 = vld [vmem:[%s6 + $0x10] sm:$0xff]
  %v1001 = vld [vmem:[%s6 + $0x18] sm:$0xff]
  %v1002 = vld [vmem:[%s7] sm:$0x1]
  %v1004 = vlaneseq
  %v1005 = vshrl.u32 %v1004, 7
  %v1006 = vsub.s32 0, %v1005
  %v1007 = vrot.slane %v1002, %v1006
  %1010 = vrot.lane.b32.xlu0 %v993, 32
  %v1011 = vpop.permute.xlu0 %1010
  %v1012 = vsel %vm66, %v1011, 0
  %1014 = vmatprep.subr.mxu0 0.0
  %1015 = vmatpush1.msra.mxu0 0.0
  %1016 = vmatprep.subr.mxu0 0.0
  %1017 = vmatpush1.msra.mxu0 0.0
  %1018 = vmatprep.subr.mxu0 0.0
  %1019 = vmatpush1.msra.mxu0 0.0
  %1020 = vmatprep.subr.mxu0 0.0
  %1021 = vmatpush1.msra.mxu0 0.0
  %1022 = vmatprep.subr.mxu0 0.0
  %1023 = vmatpush1.msra.mxu0 0.0
  %1024 = vmatprep.subr.mxu0 0.0
  %1025 = vmatpush1.msra.mxu0 0.0
  %1026 = vmatprep.subr.mxu0 0.0
  %1027 = vmatpush1.msra.mxu0 0.0
  %1028 = vmatprep.subr.mxu0 0.0
  %1029 = vmatpush1.msra.mxu0 0.0
  %1030 = vmatprep.subr.mxu0 0.0
  %1031 = vmatpush1.msra.mxu0 0.0
  %1032 = vmatprep.subr.mxu0 0.0
  %1033 = vmatpush1.msra.mxu0 0.0
  %1034 = vmatprep.subr.mxu0 0.0
  %1035 = vmatpush1.msra.mxu0 0.0
  %1036 = vmatprep.subr.mxu0 0.0
  %1037 = vmatpush1.msra.mxu0 0.0
  %1038 = vmatprep.subr.mxu0 0.0
  %1039 = vmatpush1.msra.mxu0 %v997
  %1040 = vmatprep.subr.mxu0 0.0
  %1041 = vmatpush1.msra.mxu0 %v996
  %1042 = vmatprep.subr.mxu0 0.0
  %1043 = vmatpush1.msra.mxu0 %v995
  %1044 = vmatprep.subr.mxu0 0.0
  %1045 = vmatpush1.msra.mxu0 %v994
  %1046 = vmatprep.subr.mxu0 0.0
  %1047 = vmatpush2.msra.mxu0 0.0
  %1048 = vmatprep.subr.mxu0 0.0
  %1049 = vmatpush2.msra.mxu0 0.0
  %1050 = vmatprep.subr.mxu0 0.0
  %1051 = vmatpush2.msra.mxu0 0.0
  %1052 = vmatprep.subr.mxu0 0.0
  %1053 = vmatpush2.msra.mxu0 0.0
  %1054 = vmatprep.subr.mxu0 0.0
  %1055 = vmatpush2.msra.mxu0 0.0
  %1056 = vmatprep.subr.mxu0 0.0
  %1057 = vmatpush2.msra.mxu0 0.0
  %1058 = vmatprep.subr.mxu0 0.0
  %1059 = vmatpush2.msra.mxu0 0.0
  %1060 = vmatprep.subr.mxu0 0.0
  %1061 = vmatpush2.msra.mxu0 0.0
  %1062 = vmatprep.subr.mxu0 0.0
  %1063 = vmatpush2.msra.mxu0 0.0
  %1064 = vmatprep.subr.mxu0 0.0
  %1065 = vmatpush2.msra.mxu0 0.0
  %1066 = vmatprep.subr.mxu0 0.0
  %1067 = vmatpush2.msra.mxu0 0.0
  %1068 = vmatprep.subr.mxu0 0.0
  %1069 = vmatpush2.msra.mxu0 0.0
  %1070 = vmatprep.subr.mxu0 0.0
  %1071 = vmatpush2.msra.mxu0 0.0
  %1072 = vmatprep.subr.mxu0 0.0
  %1073 = vmatpush2.msra.mxu0 0.0
  %1074 = vmatprep.subr.mxu0 0.0
  %1075 = vmatpush2.msra.mxu0 0.0
  %1076 = vmatprep.subr.mxu0 0.0
  %1077 = vmatpush2.msra.mxu0 0.0
  %1078 = vmatprep.mubr.f32.mxu0 0.0
  %1079 = vmatmul.mubr.f32.gmra.mxu0 %v297
  %v1080 = vpop.f32.mrf.mxu0
  %v1081 = vadd.f32 %v1007, %v1080
  %v1082 = vpop.f32.mrf.mxu0
  %1083 = vmatprep.mubr.f32.mxu0 0.0
  %1084 = vmatmul.mubr.f32.gmra.mxu0 %v397
  %v1085 = vpop.f32.mrf.mxu0
  %v1086 = vadd.f32 %v1007, %v1085
  %v1087 = vpop.f32.mrf.mxu0
  %1088 = vmatprep.mubr.f32.mxu0 0.0
  %1089 = vmatmul.mubr.f32.gmra.mxu0 %v497
  %v1090 = vpop.f32.mrf.mxu0
  %v1091 = vadd.f32 %v1007, %v1090
  %v1092 = vpop.f32.mrf.mxu0
  %1093 = vmatprep.mubr.f32.mxu0 0.0
  %1094 = vmatmul.mubr.f32.gmra.mxu0 %v597
  %v1095 = vpop.f32.mrf.mxu0
  %v1096 = vadd.f32 %v1007, %v1095
  %v1097 = vpop.f32.mrf.mxu0
  %1098 = vmatprep.mubr.f32.mxu0 0.0
  %1099 = vmatmul.mubr.f32.gmra.mxu0 %v697
  %v1100 = vpop.f32.mrf.mxu0
  %v1101 = vadd.f32 %v1007, %v1100
  %v1102 = vpop.f32.mrf.mxu0
  %1103 = vmatprep.mubr.f32.mxu0 0.0
  %1104 = vmatmul.mubr.f32.gmra.mxu0 %v797
  %v1105 = vpop.f32.mrf.mxu0
  %v1106 = vadd.f32 %v1007, %v1105
  %v1107 = vpop.f32.mrf.mxu0
  %1108 = vmatprep.mubr.f32.mxu0 0.0
  %1109 = vmatmul.mubr.f32.gmra.mxu0 %v897
  %v1110 = vpop.f32.mrf.mxu0
  %v1111 = vadd.f32 %v1007, %v1110
  %v1112 = vpop.f32.mrf.mxu0
  %1113 = vmatprep.mubr.f32.mxu0 0.0
  %1114 = vmatmul.mubr.f32.gmra.mxu0 %v1012
  %v1115 = vpop.f32.mrf.mxu0
  %v1116 = vadd.f32 %v1007, %v1115
  %v1117 = vpop.f32.mrf.mxu0
  %1118 = vdwg.mxu0
  %1119 = vmatprep.subr.mxu0 0.0
  %1120 = vmatpush1.msra.mxu0 0.0
  %1121 = vmatprep.subr.mxu0 0.0
  %1122 = vmatpush1.msra.mxu0 0.0
  %1123 = vmatprep.subr.mxu0 0.0
  %1124 = vmatpush1.msra.mxu0 0.0
  %1125 = vmatprep.subr.mxu0 0.0
  %1126 = vmatpush1.msra.mxu0 0.0
  %1127 = vmatprep.subr.mxu0 0.0
  %1128 = vmatpush1.msra.mxu0 0.0
  %1129 = vmatprep.subr.mxu0 0.0
  %1130 = vmatpush1.msra.mxu0 0.0
  %1131 = vmatprep.subr.mxu0 0.0
  %1132 = vmatpush1.msra.mxu0 0.0
  %1133 = vmatprep.subr.mxu0 0.0
  %1134 = vmatpush1.msra.mxu0 0.0
  %1135 = vmatprep.subr.mxu0 0.0
  %1136 = vmatpush1.msra.mxu0 0.0
  %1137 = vmatprep.subr.mxu0 0.0
  %1138 = vmatpush1.msra.mxu0 0.0
  %1139 = vmatprep.subr.mxu0 0.0
  %1140 = vmatpush1.msra.mxu0 0.0
  %1141 = vmatprep.subr.mxu0 0.0
  %1142 = vmatpush1.msra.mxu0 0.0
  %1143 = vmatprep.subr.mxu0 0.0
  %1144 = vmatpush1.msra.mxu0 %v1001
  %1145 = vmatprep.subr.mxu0 0.0
  %1146 = vmatpush1.msra.mxu0 %v1000
  %1147 = vmatprep.subr.mxu0 0.0
  %1148 = vmatpush1.msra.mxu0 %v999
  %1149 = vmatprep.subr.mxu0 0.0
  %1150 = vmatpush1.msra.mxu0 %v998
  %1151 = vmatprep.subr.mxu0 0.0
  %1152 = vmatpush2.msra.mxu0 0.0
  %1153 = vmatprep.subr.mxu0 0.0
  %1154 = vmatpush2.msra.mxu0 0.0
  %1155 = vmatprep.subr.mxu0 0.0
  %1156 = vmatpush2.msra.mxu0 0.0
  %1157 = vmatprep.subr.mxu0 0.0
  %1158 = vmatpush2.msra.mxu0 0.0
  %1159 = vmatprep.subr.mxu0 0.0
  %1160 = vmatpush2.msra.mxu0 0.0
  %1161 = vmatprep.subr.mxu0 0.0
  %1162 = vmatpush2.msra.mxu0 0.0
  %1163 = vmatprep.subr.mxu0 0.0
  %1164 = vmatpush2.msra.mxu0 0.0
  %1165 = vmatprep.subr.mxu0 0.0
  %1166 = vmatpush2.msra.mxu0 0.0
  %1167 = vmatprep.subr.mxu0 0.0
  %1168 = vmatpush2.msra.mxu0 0.0
  %1169 = vmatprep.subr.mxu0 0.0
  %1170 = vmatpush2.msra.mxu0 0.0
  %1171 = vmatprep.subr.mxu0 0.0
  %1172 = vmatpush2.msra.mxu0 0.0
  %1173 = vmatprep.subr.mxu0 0.0
  %1174 = vmatpush2.msra.mxu0 0.0
  %1175 = vmatprep.subr.mxu0 0.0
  %1176 = vmatpush2.msra.mxu0 0.0
  %1177 = vmatprep.subr.mxu0 0.0
  %1178 = vmatpush2.msra.mxu0 0.0
  %1179 = vmatprep.subr.mxu0 0.0
  %1180 = vmatpush2.msra.mxu0 0.0
  %1181 = vmatprep.subr.mxu0 0.0
  %1182 = vmatpush2.msra.mxu0 0.0
  %1183 = vmatprep.mubr.f32.mxu0 0.0
  %1184 = vmatmul.mubr.f32.gmra.mxu0 %v197
  %v1185 = vpop.f32.mrf.mxu0
  %v1186 = vadd.f32 0.0, %v1185
  %v1187 = vpop.f32.mrf.mxu0
  %1188 = vdwg.mxu0
  %v1189 = vadd.f32 %v1081, %v1186
  %v1190 = vxor.u32 %v1189, 2147483648
  %v1191 = vmul.f32 %v1190, 1.442695
  %v1192 = vpow.pop %v1191
  %v1193 = vadd.f32 %v1192, 1.0
  %v1194 = vrcp.pop %v1193
  %v1195 = vmul.f32 1.0, %v1194
  %v1196 = vtanh.pop %v1189
  %v1197 = vmul.f32 %v1195, 0.0
  %1199 = vrot.lane.b32.xlu0 %v1196, 64
  %v1200 = vpop.permute.xlu0 %1199
  %v1202 = vmul.f32 %v1195, %v1200
  %1204 = vrot.lane.b32.xlu0 %v1202, 32
  %v1205 = vpop.permute.xlu0 %1204
  %v1207 = vadd.f32 %v1197, %v1205
  %v1208 = vtanh.pop %v1207
  %1210 = vrot.lane.b32.xlu0 %v1208, 64
  %v1211 = vpop.permute.xlu0 %1210
  %v1213 = vmul.f32 %v1195, %v1211
  %p1214 = scmp.eq.s32.totalorder %s42, 0
  %s1215 = scalar_select %p1214, 1, 0
  %v1216 = vstv %s1215
  %vm1217 = vcmp.eq.s32.totalorder %v1216, 1
  %v1218 = vsel %vm1217, %v1213, 0.0
  %1220 = vrot.lane.b32.xlu0 %v1213, 32
  %v1221 = vpop.permute.xlu0 %1220
  %v1222 = vsel %vm66, %v1221, 0
  %1224 = vmatprep.subr.mxu0 0.0
  %1225 = vmatpush1.msra.mxu0 0.0
  %1226 = vmatprep.subr.mxu0 0.0
  %1227 = vmatpush1.msra.mxu0 0.0
  %1228 = vmatprep.subr.mxu0 0.0
  %1229 = vmatpush1.msra.mxu0 0.0
  %1230 = vmatprep.subr.mxu0 0.0
  %1231 = vmatpush1.msra.mxu0 0.0
  %1232 = vmatprep.subr.mxu0 0.0
  %1233 = vmatpush1.msra.mxu0 0.0
  %1234 = vmatprep.subr.mxu0 0.0
  %1235 = vmatpush1.msra.mxu0 0.0
  %1236 = vmatprep.subr.mxu0 0.0
  %1237 = vmatpush1.msra.mxu0 0.0
  %1238 = vmatprep.subr.mxu0 0.0
  %1239 = vmatpush1.msra.mxu0 0.0
  %1240 = vmatprep.subr.mxu0 0.0
  %1241 = vmatpush1.msra.mxu0 0.0
  %1242 = vmatprep.subr.mxu0 0.0
  %1243 = vmatpush1.msra.mxu0 0.0
  %1244 = vmatprep.subr.mxu0 0.0
  %1245 = vmatpush1.msra.mxu0 0.0
  %1246 = vmatprep.subr.mxu0 0.0
  %1247 = vmatpush1.msra.mxu0 0.0
  %1248 = vmatprep.subr.mxu0 0.0
  %1249 = vmatpush1.msra.mxu0 %v1001
  %1250 = vmatprep.subr.mxu0 0.0
  %1251 = vmatpush1.msra.mxu0 %v1000
  %1252 = vmatprep.subr.mxu0 0.0
  %1253 = vmatpush1.msra.mxu0 %v999
  %1254 = vmatprep.subr.mxu0 0.0
  %1255 = vmatpush1.msra.mxu0 %v998
  %1256 = vmatprep.subr.mxu0 0.0
  %1257 = vmatpush2.msra.mxu0 0.0
  %1258 = vmatprep.subr.mxu0 0.0
  %1259 = vmatpush2.msra.mxu0 0.0
  %1260 = vmatprep.subr.mxu0 0.0
  %1261 = vmatpush2.msra.mxu0 0.0
  %1262 = vmatprep.subr.mxu0 0.0
  %1263 = vmatpush2.msra.mxu0 0.0
  %1264 = vmatprep.subr.mxu0 0.0
  %1265 = vmatpush2.msra.mxu0 0.0
  %1266 = vmatprep.subr.mxu0 0.0
  %1267 = vmatpush2.msra.mxu0 0.0
  %1268 = vmatprep.subr.mxu0 0.0
  %1269 = vmatpush2.msra.mxu0 0.0
  %1270 = vmatprep.subr.mxu0 0.0
  %1271 = vmatpush2.msra.mxu0 0.0
  %1272 = vmatprep.subr.mxu0 0.0
  %1273 = vmatpush2.msra.mxu0 0.0
  %1274 = vmatprep.subr.mxu0 0.0
  %1275 = vmatpush2.msra.mxu0 0.0
  %1276 = vmatprep.subr.mxu0 0.0
  %1277 = vmatpush2.msra.mxu0 0.0
  %1278 = vmatprep.subr.mxu0 0.0
  %1279 = vmatpush2.msra.mxu0 0.0
  %1280 = vmatprep.subr.mxu0 0.0
  %1281 = vmatpush2.msra.mxu0 0.0
  %1282 = vmatprep.subr.mxu0 0.0
  %1283 = vmatpush2.msra.mxu0 0.0
  %1284 = vmatprep.subr.mxu0 0.0
  %1285 = vmatpush2.msra.mxu0 0.0
  %1286 = vmatprep.subr.mxu0 0.0
  %1287 = vmatpush2.msra.mxu0 0.0
  %1288 = vmatprep.mubr.f32.mxu0 0.0
  %1289 = vmatmul.mubr.f32.gmra.mxu0 %v1222
  %v1290 = vpop.f32.mrf.mxu0
  %v1291 = vadd.f32 0.0, %v1290
  %v1292 = vpop.f32.mrf.mxu0
  %1293 = vdwg.mxu0
  %v1294 = vadd.f32 %v1086, %v1291
  %v1295 = vxor.u32 %v1294, 2147483648
  %v1296 = vmul.f32 %v1295, 1.442695
  %v1297 = vpow.pop %v1296
  %v1298 = vadd.f32 %v1297, 1.0
  %v1299 = vrcp.pop %v1298
  %v1300 = vmul.f32 1.0, %v1299
  %v1301 = vtanh.pop %v1294
  %v1302 = vmul.f32 %v1300, %v1207
  %1304 = vrot.lane.b32.xlu0 %v1301, 64
  %v1305 = vpop.permute.xlu0 %1304
  %v1307 = vmul.f32 %v1300, %v1305
  %1309 = vrot.lane.b32.xlu0 %v1307, 32
  %v1310 = vpop.permute.xlu0 %1309
  %v1312 = vadd.f32 %v1302, %v1310
  %v1313 = vtanh.pop %v1312
  %1315 = vrot.lane.b32.xlu0 %v1313, 64
  %v1316 = vpop.permute.xlu0 %1315
  %v1318 = vmul.f32 %v1300, %v1316
  %p1319 = scmp.eq.s32.totalorder %s42, 1
  %s1320 = scalar_select %p1319, 1, 0
  %v1321 = vstv %s1320
  %vm1322 = vcmp.eq.s32.totalorder %v1321, 1
  %v1323 = vsel %vm1322, %v1318, %v1218
  %1325 = vrot.lane.b32.xlu0 %v1318, 32
  %v1326 = vpop.permute.xlu0 %1325
  %v1327 = vsel %vm66, %v1326, 0
  %1329 = vmatprep.subr.mxu0 0.0
  %1330 = vmatpush1.msra.mxu0 0.0
  %1331 = vmatprep.subr.mxu0 0.0
  %1332 = vmatpush1.msra.mxu0 0.0
  %1333 = vmatprep.subr.mxu0 0.0
  %1334 = vmatpush1.msra.mxu0 0.0
  %1335 = vmatprep.subr.mxu0 0.0
  %1336 = vmatpush1.msra.mxu0 0.0
  %1337 = vmatprep.subr.mxu0 0.0
  %1338 = vmatpush1.msra.mxu0 0.0
  %1339 = vmatprep.subr.mxu0 0.0
  %1340 = vmatpush1.msra.mxu0 0.0
  %1341 = vmatprep.subr.mxu0 0.0
  %1342 = vmatpush1.msra.mxu0 0.0
  %1343 = vmatprep.subr.mxu0 0.0
  %1344 = vmatpush1.msra.mxu0 0.0
  %1345 = vmatprep.subr.mxu0 0.0
  %1346 = vmatpush1.msra.mxu0 0.0
  %1347 = vmatprep.subr.mxu0 0.0
  %1348 = vmatpush1.msra.mxu0 0.0
  %1349 = vmatprep.subr.mxu0 0.0
  %1350 = vmatpush1.msra.mxu0 0.0
  %1351 = vmatprep.subr.mxu0 0.0
  %1352 = vmatpush1.msra.mxu0 0.0
  %1353 = vmatprep.subr.mxu0 0.0
  %1354 = vmatpush1.msra.mxu0 %v1001
  %1355 = vmatprep.subr.mxu0 0.0
  %1356 = vmatpush1.msra.mxu0 %v1000
  %1357 = vmatprep.subr.mxu0 0.0
  %1358 = vmatpush1.msra.mxu0 %v999
  %1359 = vmatprep.subr.mxu0 0.0
  %1360 = vmatpush1.msra.mxu0 %v998
  %1361 = vmatprep.subr.mxu0 0.0
  %1362 = vmatpush2.msra.mxu0 0.0
  %1363 = vmatprep.subr.mxu0 0.0
  %1364 = vmatpush2.msra.mxu0 0.0
  %1365 = vmatprep.subr.mxu0 0.0
  %1366 = vmatpush2.msra.mxu0 0.0
  %1367 = vmatprep.subr.mxu0 0.0
  %1368 = vmatpush2.msra.mxu0 0.0
  %1369 = vmatprep.subr.mxu0 0.0
  %1370 = vmatpush2.msra.mxu0 0.0
  %1371 = vmatprep.subr.mxu0 0.0
  %1372 = vmatpush2.msra.mxu0 0.0
  %1373 = vmatprep.subr.mxu0 0.0
  %1374 = vmatpush2.msra.mxu0 0.0
  %1375 = vmatprep.subr.mxu0 0.0
  %1376 = vmatpush2.msra.mxu0 0.0
  %1377 = vmatprep.subr.mxu0 0.0
  %1378 = vmatpush2.msra.mxu0 0.0
  %1379 = vmatprep.subr.mxu0 0.0
  %1380 = vmatpush2.msra.mxu0 0.0
  %1381 = vmatprep.subr.mxu0 0.0
  %1382 = vmatpush2.msra.mxu0 0.0
  %1383 = vmatprep.subr.mxu0 0.0
  %1384 = vmatpush2.msra.mxu0 0.0
  %1385 = vmatprep.subr.mxu0 0.0
  %1386 = vmatpush2.msra.mxu0 0.0
  %1387 = vmatprep.subr.mxu0 0.0
  %1388 = vmatpush2.msra.mxu0 0.0
  %1389 = vmatprep.subr.mxu0 0.0
  %1390 = vmatpush2.msra.mxu0 0.0
  %1391 = vmatprep.subr.mxu0 0.0
  %1392 = vmatpush2.msra.mxu0 0.0
  %1393 = vmatprep.mubr.f32.mxu0 0.0
  %1394 = vmatmul.mubr.f32.gmra.mxu0 %v1327
  %v1395 = vpop.f32.mrf.mxu0
  %v1396 = vadd.f32 0.0, %v1395
  %v1397 = vpop.f32.mrf.mxu0
  %1398 = vdwg.mxu0
  %v1399 = vadd.f32 %v1091, %v1396
  %v1400 = vxor.u32 %v1399, 2147483648
  %v1401 = vmul.f32 %v1400, 1.442695
  %v1402 = vpow.pop %v1401
  %v1403 = vadd.f32 %v1402, 1.0
  %v1404 = vrcp.pop %v1403
  %v1405 = vmul.f32 1.0, %v1404
  %v1406 = vtanh.pop %v1399
  %v1407 = vmul.f32 %v1405, %v1312
  %1409 = vrot.lane.b32.xlu0 %v1406, 64
  %v1410 = vpop.permute.xlu0 %1409
  %v1412 = vmul.f32 %v1405, %v1410
  %1414 = vrot.lane.b32.xlu0 %v1412, 32
  %v1415 = vpop.permute.xlu0 %1414
  %v1417 = vadd.f32 %v1407, %v1415
  %v1418 = vtanh.pop %v1417
  %1420 = vrot.lane.b32.xlu0 %v1418, 64
  %v1421 = vpop.permute.xlu0 %1420
  %v1423 = vmul.f32 %v1405, %v1421
  %p1424 = scmp.eq.s32.totalorder %s42, 2
  %s1425 = scalar_select %p1424, 1, 0
  %v1426 = vstv %s1425
  %vm1427 = vcmp.eq.s32.totalorder %v1426, 1
  %v1428 = vsel %vm1427, %v1423, %v1323
  %1430 = vrot.lane.b32.xlu0 %v1423, 32
  %v1431 = vpop.permute.xlu0 %1430
  %v1432 = vsel %vm66, %v1431, 0
  %1434 = vmatprep.subr.mxu0 0.0
  %1435 = vmatpush1.msra.mxu0 0.0
  %1436 = vmatprep.subr.mxu0 0.0
  %1437 = vmatpush1.msra.mxu0 0.0
  %1438 = vmatprep.subr.mxu0 0.0
  %1439 = vmatpush1.msra.mxu0 0.0
  %1440 = vmatprep.subr.mxu0 0.0
  %1441 = vmatpush1.msra.mxu0 0.0
  %1442 = vmatprep.subr.mxu0 0.0
  %1443 = vmatpush1.msra.mxu0 0.0
  %1444 = vmatprep.subr.mxu0 0.0
  %1445 = vmatpush1.msra.mxu0 0.0
  %1446 = vmatprep.subr.mxu0 0.0
  %1447 = vmatpush1.msra.mxu0 0.0
  %1448 = vmatprep.subr.mxu0 0.0
  %1449 = vmatpush1.msra.mxu0 0.0
  %1450 = vmatprep.subr.mxu0 0.0
  %1451 = vmatpush1.msra.mxu0 0.0
  %1452 = vmatprep.subr.mxu0 0.0
  %1453 = vmatpush1.msra.mxu0 0.0
  %1454 = vmatprep.subr.mxu0 0.0
  %1455 = vmatpush1.msra.mxu0 0.0
  %1456 = vmatprep.subr.mxu0 0.0
  %1457 = vmatpush1.msra.mxu0 0.0
  %1458 = vmatprep.subr.mxu0 0.0
  %1459 = vmatpush1.msra.mxu0 %v1001
  %1460 = vmatprep.subr.mxu0 0.0
  %1461 = vmatpush1.msra.mxu0 %v1000
  %1462 = vmatprep.subr.mxu0 0.0
  %1463 = vmatpush1.msra.mxu0 %v999
  %1464 = vmatprep.subr.mxu0 0.0
  %1465 = vmatpush1.msra.mxu0 %v998
  %1466 = vmatprep.subr.mxu0 0.0
  %1467 = vmatpush2.msra.mxu0 0.0
  %1468 = vmatprep.subr.mxu0 0.0
  %1469 = vmatpush2.msra.mxu0 0.0
  %1470 = vmatprep.subr.mxu0 0.0
  %1471 = vmatpush2.msra.mxu0 0.0
  %1472 = vmatprep.subr.mxu0 0.0
  %1473 = vmatpush2.msra.mxu0 0.0
  %1474 = vmatprep.subr.mxu0 0.0
  %1475 = vmatpush2.msra.mxu0 0.0
  %1476 = vmatprep.subr.mxu0 0.0
  %1477 = vmatpush2.msra.mxu0 0.0
  %1478 = vmatprep.subr.mxu0 0.0
  %1479 = vmatpush2.msra.mxu0 0.0
  %1480 = vmatprep.subr.mxu0 0.0
  %1481 = vmatpush2.msra.mxu0 0.0
  %1482 = vmatprep.subr.mxu0 0.0
  %1483 = vmatpush2.msra.mxu0 0.0
  %1484 = vmatprep.subr.mxu0 0.0
  %1485 = vmatpush2.msra.mxu0 0.0
  %1486 = vmatprep.subr.mxu0 0.0
  %1487 = vmatpush2.msra.mxu0 0.0
  %1488 = vmatprep.subr.mxu0 0.0
  %1489 = vmatpush2.msra.mxu0 0.0
  %1490 = vmatprep.subr.mxu0 0.0
  %1491 = vmatpush2.msra.mxu0 0.0
  %1492 = vmatprep.subr.mxu0 0.0
  %1493 = vmatpush2.msra.mxu0 0.0
  %1494 = vmatprep.subr.mxu0 0.0
  %1495 = vmatpush2.msra.mxu0 0.0
  %1496 = vmatprep.subr.mxu0 0.0
  %1497 = vmatpush2.msra.mxu0 0.0
  %1498 = vmatprep.mubr.f32.mxu0 0.0
  %1499 = vmatmul.mubr.f32.gmra.mxu0 %v1432
  %v1500 = vpop.f32.mrf.mxu0
  %v1501 = vadd.f32 0.0, %v1500
  %v1502 = vpop.f32.mrf.mxu0
  %1503 = vdwg.mxu0
  %v1504 = vadd.f32 %v1096, %v1501
  %v1505 = vxor.u32 %v1504, 2147483648
  %v1506 = vmul.f32 %v1505, 1.442695
  %v1507 = vpow.pop %v1506
  %v1508 = vadd.f32 %v1507, 1.0
  %v1509 = vrcp.pop %v1508
  %v1510 = vmul.f32 1.0, %v1509
  %v1511 = vtanh.pop %v1504
  %v1512 = vmul.f32 %v1510, %v1417
  %1514 = vrot.lane.b32.xlu0 %v1511, 64
  %v1515 = vpop.permute.xlu0 %1514
  %v1517 = vmul.f32 %v1510, %v1515
  %1519 = vrot.lane.b32.xlu0 %v1517, 32
  %v1520 = vpop.permute.xlu0 %1519
  %v1522 = vadd.f32 %v1512, %v1520
  %v1523 = vtanh.pop %v1522
  %1525 = vrot.lane.b32.xlu0 %v1523, 64
  %v1526 = vpop.permute.xlu0 %1525
  %v1528 = vmul.f32 %v1510, %v1526
  %p1529 = scmp.eq.s32.totalorder %s42, 3
  %s1530 = scalar_select %p1529, 1, 0
  %v1531 = vstv %s1530
  %vm1532 = vcmp.eq.s32.totalorder %v1531, 1
  %v1533 = vsel %vm1532, %v1528, %v1428
  %1535 = vrot.lane.b32.xlu0 %v1528, 32
  %v1536 = vpop.permute.xlu0 %1535
  %v1537 = vsel %vm66, %v1536, 0
  %1539 = vmatprep.subr.mxu0 0.0
  %1540 = vmatpush1.msra.mxu0 0.0
  %1541 = vmatprep.subr.mxu0 0.0
  %1542 = vmatpush1.msra.mxu0 0.0
  %1543 = vmatprep.subr.mxu0 0.0
  %1544 = vmatpush1.msra.mxu0 0.0
  %1545 = vmatprep.subr.mxu0 0.0
  %1546 = vmatpush1.msra.mxu0 0.0
  %1547 = vmatprep.subr.mxu0 0.0
  %1548 = vmatpush1.msra.mxu0 0.0
  %1549 = vmatprep.subr.mxu0 0.0
  %1550 = vmatpush1.msra.mxu0 0.0
  %1551 = vmatprep.subr.mxu0 0.0
  %1552 = vmatpush1.msra.mxu0 0.0
  %1553 = vmatprep.subr.mxu0 0.0
  %1554 = vmatpush1.msra.mxu0 0.0
  %1555 = vmatprep.subr.mxu0 0.0
  %1556 = vmatpush1.msra.mxu0 0.0
  %1557 = vmatprep.subr.mxu0 0.0
  %1558 = vmatpush1.msra.mxu0 0.0
  %1559 = vmatprep.subr.mxu0 0.0
  %1560 = vmatpush1.msra.mxu0 0.0
  %1561 = vmatprep.subr.mxu0 0.0
  %1562 = vmatpush1.msra.mxu0 0.0
  %1563 = vmatprep.subr.mxu0 0.0
  %1564 = vmatpush1.msra.mxu0 %v1001
  %1565 = vmatprep.subr.mxu0 0.0
  %1566 = vmatpush1.msra.mxu0 %v1000
  %1567 = vmatprep.subr.mxu0 0.0
  %1568 = vmatpush1.msra.mxu0 %v999
  %1569 = vmatprep.subr.mxu0 0.0
  %1570 = vmatpush1.msra.mxu0 %v998
  %1571 = vmatprep.subr.mxu0 0.0
  %1572 = vmatpush2.msra.mxu0 0.0
  %1573 = vmatprep.subr.mxu0 0.0
  %1574 = vmatpush2.msra.mxu0 0.0
  %1575 = vmatprep.subr.mxu0 0.0
  %1576 = vmatpush2.msra.mxu0 0.0
  %1577 = vmatprep.subr.mxu0 0.0
  %1578 = vmatpush2.msra.mxu0 0.0
  %1579 = vmatprep.subr.mxu0 0.0
  %1580 = vmatpush2.msra.mxu0 0.0
  %1581 = vmatprep.subr.mxu0 0.0
  %1582 = vmatpush2.msra.mxu0 0.0
  %1583 = vmatprep.subr.mxu0 0.0
  %1584 = vmatpush2.msra.mxu0 0.0
  %1585 = vmatprep.subr.mxu0 0.0
  %1586 = vmatpush2.msra.mxu0 0.0
  %1587 = vmatprep.subr.mxu0 0.0
  %1588 = vmatpush2.msra.mxu0 0.0
  %1589 = vmatprep.subr.mxu0 0.0
  %1590 = vmatpush2.msra.mxu0 0.0
  %1591 = vmatprep.subr.mxu0 0.0
  %1592 = vmatpush2.msra.mxu0 0.0
  %1593 = vmatprep.subr.mxu0 0.0
  %1594 = vmatpush2.msra.mxu0 0.0
  %1595 = vmatprep.subr.mxu0 0.0
  %1596 = vmatpush2.msra.mxu0 0.0
  %1597 = vmatprep.subr.mxu0 0.0
  %1598 = vmatpush2.msra.mxu0 0.0
  %1599 = vmatprep.subr.mxu0 0.0
  %1600 = vmatpush2.msra.mxu0 0.0
  %1601 = vmatprep.subr.mxu0 0.0
  %1602 = vmatpush2.msra.mxu0 0.0
  %1603 = vmatprep.mubr.f32.mxu0 0.0
  %1604 = vmatmul.mubr.f32.gmra.mxu0 %v1537
  %v1605 = vpop.f32.mrf.mxu0
  %v1606 = vadd.f32 0.0, %v1605
  %v1607 = vpop.f32.mrf.mxu0
  %1608 = vdwg.mxu0
  %v1609 = vadd.f32 %v1101, %v1606
  %v1610 = vxor.u32 %v1609, 2147483648
  %v1611 = vmul.f32 %v1610, 1.442695
  %v1612 = vpow.pop %v1611
  %v1613 = vadd.f32 %v1612, 1.0
  %v1614 = vrcp.pop %v1613
  %v1615 = vmul.f32 1.0, %v1614
  %v1616 = vtanh.pop %v1609
  %v1617 = vmul.f32 %v1615, %v1522
  %1619 = vrot.lane.b32.xlu0 %v1616, 64
  %v1620 = vpop.permute.xlu0 %1619
  %v1622 = vmul.f32 %v1615, %v1620
  %1624 = vrot.lane.b32.xlu0 %v1622, 32
  %v1625 = vpop.permute.xlu0 %1624
  %v1627 = vadd.f32 %v1617, %v1625
  %v1628 = vtanh.pop %v1627
  %1630 = vrot.lane.b32.xlu0 %v1628, 64
  %v1631 = vpop.permute.xlu0 %1630
  %v1633 = vmul.f32 %v1615, %v1631
  %p1634 = scmp.eq.s32.totalorder %s42, 4
  %s1635 = scalar_select %p1634, 1, 0
  %v1636 = vstv %s1635
  %vm1637 = vcmp.eq.s32.totalorder %v1636, 1
  %v1638 = vsel %vm1637, %v1633, %v1533
  %1640 = vrot.lane.b32.xlu0 %v1633, 32
  %v1641 = vpop.permute.xlu0 %1640
  %v1642 = vsel %vm66, %v1641, 0
  %1644 = vmatprep.subr.mxu0 0.0
  %1645 = vmatpush1.msra.mxu0 0.0
  %1646 = vmatprep.subr.mxu0 0.0
  %1647 = vmatpush1.msra.mxu0 0.0
  %1648 = vmatprep.subr.mxu0 0.0
  %1649 = vmatpush1.msra.mxu0 0.0
  %1650 = vmatprep.subr.mxu0 0.0
  %1651 = vmatpush1.msra.mxu0 0.0
  %1652 = vmatprep.subr.mxu0 0.0
  %1653 = vmatpush1.msra.mxu0 0.0
  %1654 = vmatprep.subr.mxu0 0.0
  %1655 = vmatpush1.msra.mxu0 0.0
  %1656 = vmatprep.subr.mxu0 0.0
  %1657 = vmatpush1.msra.mxu0 0.0
  %1658 = vmatprep.subr.mxu0 0.0
  %1659 = vmatpush1.msra.mxu0 0.0
  %1660 = vmatprep.subr.mxu0 0.0
  %1661 = vmatpush1.msra.mxu0 0.0
  %1662 = vmatprep.subr.mxu0 0.0
  %1663 = vmatpush1.msra.mxu0 0.0
  %1664 = vmatprep.subr.mxu0 0.0
  %1665 = vmatpush1.msra.mxu0 0.0
  %1666 = vmatprep.subr.mxu0 0.0
  %1667 = vmatpush1.msra.mxu0 0.0
  %1668 = vmatprep.subr.mxu0 0.0
  %1669 = vmatpush1.msra.mxu0 %v1001
  %1670 = vmatprep.subr.mxu0 0.0
  %1671 = vmatpush1.msra.mxu0 %v1000
  %1672 = vmatprep.subr.mxu0 0.0
  %1673 = vmatpush1.msra.mxu0 %v999
  %1674 = vmatprep.subr.mxu0 0.0
  %1675 = vmatpush1.msra.mxu0 %v998
  %1676 = vmatprep.subr.mxu0 0.0
  %1677 = vmatpush2.msra.mxu0 0.0
  %1678 = vmatprep.subr.mxu0 0.0
  %1679 = vmatpush2.msra.mxu0 0.0
  %1680 = vmatprep.subr.mxu0 0.0
  %1681 = vmatpush2.msra.mxu0 0.0
  %1682 = vmatprep.subr.mxu0 0.0
  %1683 = vmatpush2.msra.mxu0 0.0
  %1684 = vmatprep.subr.mxu0 0.0
  %1685 = vmatpush2.msra.mxu0 0.0
  %1686 = vmatprep.subr.mxu0 0.0
  %1687 = vmatpush2.msra.mxu0 0.0
  %1688 = vmatprep.subr.mxu0 0.0
  %1689 = vmatpush2.msra.mxu0 0.0
  %1690 = vmatprep.subr.mxu0 0.0
  %1691 = vmatpush2.msra.mxu0 0.0
  %1692 = vmatprep.subr.mxu0 0.0
  %1693 = vmatpush2.msra.mxu0 0.0
  %1694 = vmatprep.subr.mxu0 0.0
  %1695 = vmatpush2.msra.mxu0 0.0
  %1696 = vmatprep.subr.mxu0 0.0
  %1697 = vmatpush2.msra.mxu0 0.0
  %1698 = vmatprep.subr.mxu0 0.0
  %1699 = vmatpush2.msra.mxu0 0.0
  %1700 = vmatprep.subr.mxu0 0.0
  %1701 = vmatpush2.msra.mxu0 0.0
  %1702 = vmatprep.subr.mxu0 0.0
  %1703 = vmatpush2.msra.mxu0 0.0
  %1704 = vmatprep.subr.mxu0 0.0
  %1705 = vmatpush2.msra.mxu0 0.0
  %1706 = vmatprep.subr.mxu0 0.0
  %1707 = vmatpush2.msra.mxu0 0.0
  %1708 = vmatprep.mubr.f32.mxu0 0.0
  %1709 = vmatmul.mubr.f32.gmra.mxu0 %v1642
  %v1710 = vpop.f32.mrf.mxu0
  %v1711 = vadd.f32 0.0, %v1710
  %v1712 = vpop.f32.mrf.mxu0
  %1713 = vdwg.mxu0
  %v1714 = vadd.f32 %v1106, %v1711
  %v1715 = vxor.u32 %v1714, 2147483648
  %v1716 = vmul.f32 %v1715, 1.442695
  %v1717 = vpow.pop %v1716
  %v1718 = vadd.f32 %v1717, 1.0
  %v1719 = vrcp.pop %v1718
  %v1720 = vmul.f32 1.0, %v1719
  %v1721 = vtanh.pop %v1714
  %v1722 = vmul.f32 %v1720, %v1627
  %1724 = vrot.lane.b32.xlu0 %v1721, 64
  %v1725 = vpop.permute.xlu0 %1724
  %v1727 = vmul.f32 %v1720, %v1725
  %1729 = vrot.lane.b32.xlu0 %v1727, 32
  %v1730 = vpop.permute.xlu0 %1729
  %v1732 = vadd.f32 %v1722, %v1730
  %v1733 = vtanh.pop %v1732
  %1735 = vrot.lane.b32.xlu0 %v1733, 64
  %v1736 = vpop.permute.xlu0 %1735
  %v1738 = vmul.f32 %v1720, %v1736
  %p1739 = scmp.eq.s32.totalorder %s42, 5
  %s1740 = scalar_select %p1739, 1, 0
  %v1741 = vstv %s1740
  %vm1742 = vcmp.eq.s32.totalorder %v1741, 1
  %v1743 = vsel %vm1742, %v1738, %v1638
  %1745 = vrot.lane.b32.xlu0 %v1738, 32
  %v1746 = vpop.permute.xlu0 %1745
  %v1747 = vsel %vm66, %v1746, 0
  %1749 = vmatprep.subr.mxu0 0.0
  %1750 = vmatpush1.msra.mxu0 0.0
  %1751 = vmatprep.subr.mxu0 0.0
  %1752 = vmatpush1.msra.mxu0 0.0
  %1753 = vmatprep.subr.mxu0 0.0
  %1754 = vmatpush1.msra.mxu0 0.0
  %1755 = vmatprep.subr.mxu0 0.0
  %1756 = vmatpush1.msra.mxu0 0.0
  %1757 = vmatprep.subr.mxu0 0.0
  %1758 = vmatpush1.msra.mxu0 0.0
  %1759 = vmatprep.subr.mxu0 0.0
  %1760 = vmatpush1.msra.mxu0 0.0
  %1761 = vmatprep.subr.mxu0 0.0
  %1762 = vmatpush1.msra.mxu0 0.0
  %1763 = vmatprep.subr.mxu0 0.0
  %1764 = vmatpush1.msra.mxu0 0.0
  %1765 = vmatprep.subr.mxu0 0.0
  %1766 = vmatpush1.msra.mxu0 0.0
  %1767 = vmatprep.subr.mxu0 0.0
  %1768 = vmatpush1.msra.mxu0 0.0
  %1769 = vmatprep.subr.mxu0 0.0
  %1770 = vmatpush1.msra.mxu0 0.0
  %1771 = vmatprep.subr.mxu0 0.0
  %1772 = vmatpush1.msra.mxu0 0.0
  %1773 = vmatprep.subr.mxu0 0.0
  %1774 = vmatpush1.msra.mxu0 %v1001
  %1775 = vmatprep.subr.mxu0 0.0
  %1776 = vmatpush1.msra.mxu0 %v1000
  %1777 = vmatprep.subr.mxu0 0.0
  %1778 = vmatpush1.msra.mxu0 %v999
  %1779 = vmatprep.subr.mxu0 0.0
  %1780 = vmatpush1.msra.mxu0 %v998
  %1781 = vmatprep.subr.mxu0 0.0
  %1782 = vmatpush2.msra.mxu0 0.0
  %1783 = vmatprep.subr.mxu0 0.0
  %1784 = vmatpush2.msra.mxu0 0.0
  %1785 = vmatprep.subr.mxu0 0.0
  %1786 = vmatpush2.msra.mxu0 0.0
  %1787 = vmatprep.subr.mxu0 0.0
  %1788 = vmatpush2.msra.mxu0 0.0
  %1789 = vmatprep.subr.mxu0 0.0
  %1790 = vmatpush2.msra.mxu0 0.0
  %1791 = vmatprep.subr.mxu0 0.0
  %1792 = vmatpush2.msra.mxu0 0.0
  %1793 = vmatprep.subr.mxu0 0.0
  %1794 = vmatpush2.msra.mxu0 0.0
  %1795 = vmatprep.subr.mxu0 0.0
  %1796 = vmatpush2.msra.mxu0 0.0
  %1797 = vmatprep.subr.mxu0 0.0
  %1798 = vmatpush2.msra.mxu0 0.0
  %1799 = vmatprep.subr.mxu0 0.0
  %1800 = vmatpush2.msra.mxu0 0.0
  %1801 = vmatprep.subr.mxu0 0.0
  %1802 = vmatpush2.msra.mxu0 0.0
  %1803 = vmatprep.subr.mxu0 0.0
  %1804 = vmatpush2.msra.mxu0 0.0
  %1805 = vmatprep.subr.mxu0 0.0
  %1806 = vmatpush2.msra.mxu0 0.0
  %1807 = vmatprep.subr.mxu0 0.0
  %1808 = vmatpush2.msra.mxu0 0.0
  %1809 = vmatprep.subr.mxu0 0.0
  %1810 = vmatpush2.msra.mxu0 0.0
  %1811 = vmatprep.subr.mxu0 0.0
  %1812 = vmatpush2.msra.mxu0 0.0
  %1813 = vmatprep.mubr.f32.mxu0 0.0
  %1814 = vmatmul.mubr.f32.gmra.mxu0 %v1747
  %v1815 = vpop.f32.mrf.mxu0
  %v1816 = vadd.f32 0.0, %v1815
  %v1817 = vpop.f32.mrf.mxu0
  %1818 = vdwg.mxu0
  %v1819 = vadd.f32 %v1111, %v1816
  %v1820 = vxor.u32 %v1819, 2147483648
  %v1821 = vmul.f32 %v1820, 1.442695
  %v1822 = vpow.pop %v1821
  %v1823 = vadd.f32 %v1822, 1.0
  %v1824 = vrcp.pop %v1823
  %v1825 = vmul.f32 1.0, %v1824
  %v1826 = vtanh.pop %v1819
  %v1827 = vmul.f32 %v1825, %v1732
  %1829 = vrot.lane.b32.xlu0 %v1826, 64
  %v1830 = vpop.permute.xlu0 %1829
  %v1832 = vmul.f32 %v1825, %v1830
  %1834 = vrot.lane.b32.xlu0 %v1832, 32
  %v1835 = vpop.permute.xlu0 %1834
  %v1837 = vadd.f32 %v1827, %v1835
  %v1838 = vtanh.pop %v1837
  %1840 = vrot.lane.b32.xlu0 %v1838, 64
  %v1841 = vpop.permute.xlu0 %1840
  %v1843 = vmul.f32 %v1825, %v1841
  %p1844 = scmp.eq.s32.totalorder %s42, 6
  %s1845 = scalar_select %p1844, 1, 0
  %v1846 = vstv %s1845
  %vm1847 = vcmp.eq.s32.totalorder %v1846, 1
  %v1848 = vsel %vm1847, %v1843, %v1743
  %1850 = vrot.lane.b32.xlu0 %v1843, 32
  %v1851 = vpop.permute.xlu0 %1850
  %v1852 = vsel %vm66, %v1851, 0
  %1854 = vmatprep.subr.mxu0 0.0
  %1855 = vmatpush1.msra.mxu0 0.0
  %1856 = vmatprep.subr.mxu0 0.0
  %1857 = vmatpush1.msra.mxu0 0.0
  %1858 = vmatprep.subr.mxu0 0.0
  %1859 = vmatpush1.msra.mxu0 0.0
  %1860 = vmatprep.subr.mxu0 0.0
  %1861 = vmatpush1.msra.mxu0 0.0
  %1862 = vmatprep.subr.mxu0 0.0
  %1863 = vmatpush1.msra.mxu0 0.0
  %1864 = vmatprep.subr.mxu0 0.0
  %1865 = vmatpush1.msra.mxu0 0.0
  %1866 = vmatprep.subr.mxu0 0.0
  %1867 = vmatpush1.msra.mxu0 0.0
  %1868 = vmatprep.subr.mxu0 0.0
  %1869 = vmatpush1.msra.mxu0 0.0
  %1870 = vmatprep.subr.mxu0 0.0
  %1871 = vmatpush1.msra.mxu0 0.0
  %1872 = vmatprep.subr.mxu0 0.0
  %1873 = vmatpush1.msra.mxu0 0.0
  %1874 = vmatprep.subr.mxu0 0.0
  %1875 = vmatpush1.msra.mxu0 0.0
  %1876 = vmatprep.subr.mxu0 0.0
  %1877 = vmatpush1.msra.mxu0 0.0
  %1878 = vmatprep.subr.mxu0 0.0
  %1879 = vmatpush1.msra.mxu0 %v1001
  %1880 = vmatprep.subr.mxu0 0.0
  %1881 = vmatpush1.msra.mxu0 %v1000
  %1882 = vmatprep.subr.mxu0 0.0
  %1883 = vmatpush1.msra.mxu0 %v999
  %1884 = vmatprep.subr.mxu0 0.0
  %1885 = vmatpush1.msra.mxu0 %v998
  %1886 = vmatprep.subr.mxu0 0.0
  %1887 = vmatpush2.msra.mxu0 0.0
  %1888 = vmatprep.subr.mxu0 0.0
  %1889 = vmatpush2.msra.mxu0 0.0
  %1890 = vmatprep.subr.mxu0 0.0
  %1891 = vmatpush2.msra.mxu0 0.0
  %1892 = vmatprep.subr.mxu0 0.0
  %1893 = vmatpush2.msra.mxu0 0.0
  %1894 = vmatprep.subr.mxu0 0.0
  %1895 = vmatpush2.msra.mxu0 0.0
  %1896 = vmatprep.subr.mxu0 0.0
  %1897 = vmatpush2.msra.mxu0 0.0
  %1898 = vmatprep.subr.mxu0 0.0
  %1899 = vmatpush2.msra.mxu0 0.0
  %1900 = vmatprep.subr.mxu0 0.0
  %1901 = vmatpush2.msra.mxu0 0.0
  %1902 = vmatprep.subr.mxu0 0.0
  %1903 = vmatpush2.msra.mxu0 0.0
  %1904 = vmatprep.subr.mxu0 0.0
  %1905 = vmatpush2.msra.mxu0 0.0
  %1906 = vmatprep.subr.mxu0 0.0
  %1907 = vmatpush2.msra.mxu0 0.0
  %1908 = vmatprep.subr.mxu0 0.0
  %1909 = vmatpush2.msra.mxu0 0.0
  %1910 = vmatprep.subr.mxu0 0.0
  %1911 = vmatpush2.msra.mxu0 0.0
  %1912 = vmatprep.subr.mxu0 0.0
  %1913 = vmatpush2.msra.mxu0 0.0
  %1914 = vmatprep.subr.mxu0 0.0
  %1915 = vmatpush2.msra.mxu0 0.0
  %1916 = vmatprep.subr.mxu0 0.0
  %1917 = vmatpush2.msra.mxu0 0.0
  %1918 = vmatprep.mubr.f32.mxu0 0.0
  %1919 = vmatmul.mubr.f32.gmra.mxu0 %v1852
  %v1920 = vpop.f32.mrf.mxu0
  %v1921 = vadd.f32 0.0, %v1920
  %v1922 = vpop.f32.mrf.mxu0
  %1923 = vdwg.mxu0
  %v1924 = vadd.f32 %v1116, %v1921
  %v1925 = vxor.u32 %v1924, 2147483648
  %v1926 = vmul.f32 %v1925, 1.442695
  %v1927 = vpow.pop %v1926
  %v1928 = vadd.f32 %v1927, 1.0
  %v1929 = vrcp.pop %v1928
  %v1930 = vmul.f32 1.0, %v1929
  %v1931 = vtanh.pop %v1924
  %v1932 = vmul.f32 %v1930, %v1837
  %1934 = vrot.lane.b32.xlu0 %v1931, 64
  %v1935 = vpop.permute.xlu0 %1934
  %v1937 = vmul.f32 %v1930, %v1935
  %1939 = vrot.lane.b32.xlu0 %v1937, 32
  %v1940 = vpop.permute.xlu0 %1939
  %v1942 = vadd.f32 %v1932, %v1940
  %v1943 = vtanh.pop %v1942
  %1945 = vrot.lane.b32.xlu0 %v1943, 64
  %v1946 = vpop.permute.xlu0 %1945
  %v1948 = vmul.f32 %v1930, %v1946
  %p1949 = scmp.eq.s32.totalorder %s42, 7
  %s1950 = scalar_select %p1949, 1, 0
  %v1951 = vstv %s1950
  %vm1952 = vcmp.eq.s32.totalorder %v1951, 1
  %v1953 = vsel %vm1952, %v1948, %v1848
  %v1954 = vld [vmem:[%s8] sm:$0xff]
  %v1955 = vld [vmem:[%s8 + $0x8] sm:$0xff]
  %v1956 = vld [vmem:[%s8 + $0x10] sm:$0xff]
  %v1957 = vld [vmem:[%s8 + $0x18] sm:$0xff]
  %v1958 = vld [vmem:[%s9] sm:$0x1]
  %v1960 = vlaneseq
  %v1961 = vshrl.u32 %v1960, 7
  %v1962 = vsub.s32 0, %v1961
  %v1963 = vrot.slane %v1958, %v1962
  %1966 = vrot.lane.b32.xlu0 %v1953, 32
  %v1967 = vpop.permute.xlu0 %1966
  %v1968 = vsel %vm66, %v1967, 0
  %1970 = vmatprep.subr.mxu0 0.0
  %1971 = vmatpush1.msra.mxu0 0.0
  %1972 = vmatprep.subr.mxu0 0.0
  %1973 = vmatpush1.msra.mxu0 0.0
  %1974 = vmatprep.subr.mxu0 0.0
  %1975 = vmatpush1.msra.mxu0 0.0
  %1976 = vmatprep.subr.mxu0 0.0
  %1977 = vmatpush1.msra.mxu0 0.0
  %1978 = vmatprep.subr.mxu0 0.0
  %1979 = vmatpush1.msra.mxu0 0.0
  %1980 = vmatprep.subr.mxu0 0.0
  %1981 = vmatpush1.msra.mxu0 0.0
  %1982 = vmatprep.subr.mxu0 0.0
  %1983 = vmatpush1.msra.mxu0 0.0
  %1984 = vmatprep.subr.mxu0 0.0
  %1985 = vmatpush1.msra.mxu0 0.0
  %1986 = vmatprep.subr.mxu0 0.0
  %1987 = vmatpush1.msra.mxu0 0.0
  %1988 = vmatprep.subr.mxu0 0.0
  %1989 = vmatpush1.msra.mxu0 0.0
  %1990 = vmatprep.subr.mxu0 0.0
  %1991 = vmatpush1.msra.mxu0 0.0
  %1992 = vmatprep.subr.mxu0 0.0
  %1993 = vmatpush1.msra.mxu0 0.0
  %1994 = vmatprep.subr.mxu0 0.0
  %1995 = vmatpush1.msra.mxu0 %v1957
  %1996 = vmatprep.subr.mxu0 0.0
  %1997 = vmatpush1.msra.mxu0 %v1956
  %1998 = vmatprep.subr.mxu0 0.0
  %1999 = vmatpush1.msra.mxu0 %v1955
  %2000 = vmatprep.subr.mxu0 0.0
  %2001 = vmatpush1.msra.mxu0 %v1954
  %2002 = vmatprep.subr.mxu0 0.0
  %2003 = vmatpush2.msra.mxu0 0.0
  %2004 = vmatprep.subr.mxu0 0.0
  %2005 = vmatpush2.msra.mxu0 0.0
  %2006 = vmatprep.subr.mxu0 0.0
  %2007 = vmatpush2.msra.mxu0 0.0
  %2008 = vmatprep.subr.mxu0 0.0
  %2009 = vmatpush2.msra.mxu0 0.0
  %2010 = vmatprep.subr.mxu0 0.0
  %2011 = vmatpush2.msra.mxu0 0.0
  %2012 = vmatprep.subr.mxu0 0.0
  %2013 = vmatpush2.msra.mxu0 0.0
  %2014 = vmatprep.subr.mxu0 0.0
  %2015 = vmatpush2.msra.mxu0 0.0
  %2016 = vmatprep.subr.mxu0 0.0
  %2017 = vmatpush2.msra.mxu0 0.0
  %2018 = vmatprep.subr.mxu0 0.0
  %2019 = vmatpush2.msra.mxu0 0.0
  %2020 = vmatprep.subr.mxu0 0.0
  %2021 = vmatpush2.msra.mxu0 0.0
  %2022 = vmatprep.subr.mxu0 0.0
  %2023 = vmatpush2.msra.mxu0 0.0
  %2024 = vmatprep.subr.mxu0 0.0
  %2025 = vmatpush2.msra.mxu0 0.0
  %2026 = vmatprep.subr.mxu0 0.0
  %2027 = vmatpush2.msra.mxu0 0.0
  %2028 = vmatprep.subr.mxu0 0.0
  %2029 = vmatpush2.msra.mxu0 0.0
  %2030 = vmatprep.subr.mxu0 0.0
  %2031 = vmatpush2.msra.mxu0 0.0
  %2032 = vmatprep.subr.mxu0 0.0
  %2033 = vmatpush2.msra.mxu0 0.0
  %2034 = vmatprep.mubr.f32.mxu0 0.0
  %2035 = vmatmul.mubr.f32.gmra.mxu0 %v1968
  %v2036 = vpop.f32.mrf.mxu0
  %v2037 = vadd.f32 %v1963, %v2036
  %v2038 = vpop.f32.mrf.mxu0
  %2039 = vdwg.mxu0
  %v2040 = vmax.f32 %v2037, 0.0
  %v2041 = vld [vmem:[%s10] sm:$0xff]
  %v2042 = vld [vmem:[%s10 + $0x8] sm:$0xff]
  %v2043 = vld [vmem:[%s10 + $0x10] sm:$0xff]
  %v2044 = vld [vmem:[%s10 + $0x18] sm:$0xff]
  %v2045 = vld [vmem:[%s10 + $0x20] sm:$0xff]
  %v2046 = vld [vmem:[%s10 + $0x28] sm:$0xff]
  %v2047 = vld [vmem:[%s10 + $0x30] sm:$0xff]
  %v2048 = vld [vmem:[%s10 + $0x38] sm:$0xff]
  %v2049 = vld [vmem:[%s10 + $0x40] sm:$0xff]
  %v2050 = vld [vmem:[%s10 + $0x48] sm:$0xff]
  %v2051 = vld [vmem:[%s10 + $0x50] sm:$0xff]
  %v2052 = vld [vmem:[%s10 + $0x58] sm:$0xff]
  %v2053 = vld [vmem:[%s10 + $0x60] sm:$0xff]
  %v2054 = vld [vmem:[%s10 + $0x68] sm:$0xff]
  %v2055 = vld [vmem:[%s10 + $0x70] sm:$0xff]
  %v2056 = vld [vmem:[%s10 + $0x78] sm:$0xff]
  %v2057 = vld [vmem:[%s11] sm:$0x1]
  %v2059 = vlaneseq
  %v2060 = vshrl.u32 %v2059, 7
  %v2061 = vsub.s32 0, %v2060
  %v2062 = vrot.slane %v2057, %v2061
  %2064 = vmatprep.subr.mxu0 0.0
  %2065 = vmatpush1.msra.mxu0 %v2056
  %2066 = vmatprep.subr.mxu0 0.0
  %2067 = vmatpush1.msra.mxu0 %v2055
  %2068 = vmatprep.subr.mxu0 0.0
  %2069 = vmatpush1.msra.mxu0 %v2054
  %2070 = vmatprep.subr.mxu0 0.0
  %2071 = vmatpush1.msra.mxu0 %v2053
  %2072 = vmatprep.subr.mxu0 0.0
  %2073 = vmatpush1.msra.mxu0 %v2052
  %2074 = vmatprep.subr.mxu0 0.0
  %2075 = vmatpush1.msra.mxu0 %v2051
  %2076 = vmatprep.subr.mxu0 0.0
  %2077 = vmatpush1.msra.mxu0 %v2050
  %2078 = vmatprep.subr.mxu0 0.0
  %2079 = vmatpush1.msra.mxu0 %v2049
  %2080 = vmatprep.subr.mxu0 0.0
  %2081 = vmatpush1.msra.mxu0 %v2048
  %2082 = vmatprep.subr.mxu0 0.0
  %2083 = vmatpush1.msra.mxu0 %v2047
  %2084 = vmatprep.subr.mxu0 0.0
  %2085 = vmatpush1.msra.mxu0 %v2046
  %2086 = vmatprep.subr.mxu0 0.0
  %2087 = vmatpush1.msra.mxu0 %v2045
  %2088 = vmatprep.subr.mxu0 0.0
  %2089 = vmatpush1.msra.mxu0 %v2044
  %2090 = vmatprep.subr.mxu0 0.0
  %2091 = vmatpush1.msra.mxu0 %v2043
  %2092 = vmatprep.subr.mxu0 0.0
  %2093 = vmatpush1.msra.mxu0 %v2042
  %2094 = vmatprep.subr.mxu0 0.0
  %2095 = vmatpush1.msra.mxu0 %v2041
  %2096 = vmatprep.subr.mxu0 0.0
  %2097 = vmatpush2.msra.mxu0 0.0
  %2098 = vmatprep.subr.mxu0 0.0
  %2099 = vmatpush2.msra.mxu0 0.0
  %2100 = vmatprep.subr.mxu0 0.0
  %2101 = vmatpush2.msra.mxu0 0.0
  %2102 = vmatprep.subr.mxu0 0.0
  %2103 = vmatpush2.msra.mxu0 0.0
  %2104 = vmatprep.subr.mxu0 0.0
  %2105 = vmatpush2.msra.mxu0 0.0
  %2106 = vmatprep.subr.mxu0 0.0
  %2107 = vmatpush2.msra.mxu0 0.0
  %2108 = vmatprep.subr.mxu0 0.0
  %2109 = vmatpush2.msra.mxu0 0.0
  %2110 = vmatprep.subr.mxu0 0.0
  %2111 = vmatpush2.msra.mxu0 0.0
  %2112 = vmatprep.subr.mxu0 0.0
  %2113 = vmatpush2.msra.mxu0 0.0
  %2114 = vmatprep.subr.mxu0 0.0
  %2115 = vmatpush2.msra.mxu0 0.0
  %2116 = vmatprep.subr.mxu0 0.0
  %2117 = vmatpush2.msra.mxu0 0.0
  %2118 = vmatprep.subr.mxu0 0.0
  %2119 = vmatpush2.msra.mxu0 0.0
  %2120 = vmatprep.subr.mxu0 0.0
  %2121 = vmatpush2.msra.mxu0 0.0
  %2122 = vmatprep.subr.mxu0 0.0
  %2123 = vmatpush2.msra.mxu0 0.0
  %2124 = vmatprep.subr.mxu0 0.0
  %2125 = vmatpush2.msra.mxu0 0.0
  %2126 = vmatprep.subr.mxu0 0.0
  %2127 = vmatpush2.msra.mxu0 0.0
  %2128 = vmatprep.mubr.f32.mxu0 0.0
  %2129 = vmatmul.mubr.f32.gmra.mxu0 %v2040
  %v2130 = vpop.f32.mrf.mxu0
  %v2131 = vadd.f32 %v2062, %v2130
  %v2132 = vpop.f32.mrf.mxu0
  %2133 = vdwg.mxu0
  %vm2134 = vcmask 31744
  %2135 = vst.msk [vmem:[%s12] sm:$0xff] %vm2134, %v2131
  // Predicated region
  $region50: #{tpu_custom_call.1} parent=0 // pred_check
    _
  $region51: #{tpu_custom_call.1} parent=0 // pred_check_branch
    %2137 = sbr.rel (0) target = $region53
  $region52: #{tpu_custom_call.1} parent=0 // pred_region
    _
  $region53: #{tpu_custom_call.1} parent=0 // pred_fallthru
    _
  // Predicated region
  $region54: #{tpu_custom_call.1} parent=0 // pred_check
    _
  $region55: #{tpu_custom_call.1} parent=0 // pred_check_branch
    %2139 = sbr.rel (0) target = $region57
  $region56: #{tpu_custom_call.1} parent=0 // pred_region
    _
  $region57: #{tpu_custom_call.1} parent=0 // pred_fallthru
    _

</llo_original>
